<compile_context>
chip_gen: v6e
topology: v6e:2x2x1
jax: 0.10.0
libtpu: 0.0.40
codegen_flags: <defaults>
</compile_context>

<pallas_src>
import math

import jax
import jax.numpy as jnp
from jax import lax
from jax.experimental import pallas as pl
from jax.experimental.pallas import tpu as pltpu


# -----------------------------------------------------------------------------
# Hardware / tiling helpers
# -----------------------------------------------------------------------------
def _vmem_capacity_bytes():
    """Physical per-core VMEM; conservative 64 MiB (v7x) if the query fails."""
    try:
        info = pltpu.get_tpu_info()
        cap = getattr(info, "vmem_capacity_bytes", None)
        if cap:
            return int(cap)
    except Exception:
        pass
    return 64 * 1024 * 1024


def _pick_row_tile(H, W, B, footprint, budget, row_block=None):
    """Largest divisor of H that fits the VMEM budget, preferring sublane-aligned
    tiles and keeping >= 2 parallel grid units alive when B == 1 (v7x megacore)."""
    cap = H if row_block is None else max(1, min(H, int(row_block)))
    divs = [d for d in range(1, H + 1) if H % d == 0 and d <= cap]
    fit = [d for d in divs if footprint(d) <= budget] or [divs[0]]
    if B == 1:
        multi = [d for d in fit if H // d >= 2]
        if multi:
            fit = multi
    aligned = [d for d in fit if (d * W) % 8 == 0]
    return max(aligned or fit)


# -----------------------------------------------------------------------------
# Fused MLP kernel: fc1 -> depthwise 3x3 -> GELU -> fc2 on one row-tile (+halo)
# -----------------------------------------------------------------------------
def _make_fused_mlp_kernel(W, C_in, C_hid, C_out, th, n_row_tiles,
                           mm_dtype, fc2_lhs_dtype, gelu_approx):
    inv_sqrt2 = 1.0 / math.sqrt(2.0)
    tanh_c = math.sqrt(2.0 / math.pi)
    M_win = (th + 2) * W          # rows of the fc1 problem (tile + 1-row halo each side)

    def kernel(x_top_ref, x_mid_ref, x_bot_ref,
               w1_ref, b1_ref, wdw_ref, bdw_ref, w2_ref, b2_ref, o_ref):
        i = pl.program_id(1)                                     # row-tile index

        # ---- assemble (th+2, W, C_in) input window: [top halo; tile; bottom halo]
        # TODO(synk): a manual DMA into one VMEM scratch would avoid this small
        # (M_win, C_in) copy; kept since C_in is 4x narrower than the hidden dim.
        x_win = jnp.concatenate(
            [x_top_ref[0], x_mid_ref[0], x_bot_ref[0]], axis=0)

        # ---- fc1 (pointwise linear C_in -> C_hid, MXU), f32 accumulation -----
        lhs = x_win.reshape(M_win, C_in)
        if mm_dtype is not None:
            lhs = lhs.astype(mm_dtype)        # w1 is pre-cast in the wrapper
        h = jnp.dot(lhs, w1_ref[...], preferred_element_type=jnp.float32)
        h = h + b1_ref[...].astype(jnp.float32)                  # (M_win, C_hid)

        # ---- zero hidden halo rows that lie outside the image ----------------
        # (the torch depthwise conv zero-pads the *hidden* feature map, and
        #  fc1(0) == b1 != 0, so the mask must be applied after fc1; this is a
        #  single VPU select next to the 17-op dwconv MAC below)
        p = lax.broadcasted_iota(jnp.int32, (M_win, 1), 0)
        keep_row = jnp.logical_and(
            jnp.logical_or(p >= W, i > 0),                          # top halo row
            jnp.logical_or(p < (th + 1) * W, i < n_row_tiles - 1))  # bottom halo
        h = jnp.where(keep_row, h, 0.0)

        # ---- width shifts for the 3x3 taps: XLU roll + edge-column mask ------
        col = p % W
        h_l = jnp.where(col == 0, 0.0, pltpu.roll(h, shift=1, axis=0))              # c-1
        h_r = jnp.where(col == W - 1, 0.0, pltpu.roll(h, shift=M_win - 1, axis=0))  # c+1

        h3 = h.reshape(th + 2, W, C_hid)
        hl3 = h_l.reshape(th + 2, W, C_hid)
        hr3 = h_r.reshape(th + 2, W, C_hid)
        shifted = (hl3, h3, hr3)            # kx = 0 (c-1), 1 (c), 2 (c+1)

        # ---- depthwise 3x3 MAC: accumulator initialized with the first tap ---
        wdw = wdw_ref[...].astype(jnp.float32)                   # (9, C_hid)
        acc = shifted[0][0:th] * wdw[0]
        for k in range(1, 9):
            ky, kx = divmod(k, 3)
            acc = acc + shifted[kx][ky:ky + th] * wdw[k]
        acc = acc + bdw_ref[...].astype(jnp.float32)

        # ---- GELU -------------------------------------------------------------
        if gelu_approx:
            # tanh approximation: transcendental goes to the EUP slot (frees VALU)
            acc = 0.5 * acc * (1.0 + jnp.tanh(
                tanh_c * (acc + 0.044715 * (acc * acc * acc))))
        else:
            # exact erf (matches torch.nn.GELU default numerics)
            acc = 0.5 * acc * (1.0 + lax.erf(acc * inv_sqrt2))

        # ---- fc2 (C_hid -> C_out, MXU), f32 accumulation ----------------------
        lhs2 = acc.reshape(th * W, C_hid).astype(fc2_lhs_dtype)
        y = jnp.dot(lhs2, w2_ref[...], preferred_element_type=jnp.float32)
        y = y + b2_ref[...].astype(jnp.float32)
        o_ref[0] = y.reshape(th, W, C_out).astype(o_ref.dtype)

    return kernel


# -----------------------------------------------------------------------------
# Wrapper (pallas_call plumbing): mirrors Mlp.forward(x, H, W)
# -----------------------------------------------------------------------------
def mlp_forward(x, H, W, params, *, row_block=None, matmul_dtype=None,
                gelu_approx=False):
    """x: (B, N, C_in) with N == H*W  ->  (B, N, C_out)."""
    B, N, C_in = x.shape
    assert N == H * W
    w1, b1 = params["w1"], params["b1"]
    w_dw, b_dw = params["w_dw"], params["b_dw"]
    w2, b2 = params["w2"], params["b2"]
    C_hid = w1.shape[1]
    C_out = w2.shape[1]
    assert w1.shape == (C_in, C_hid) and w_dw.shape == (3, 3, C_hid)
    assert w2.shape == (C_hid, C_out)

    # Pre-cast MXU operands in the wrapper (halves weight DMA + removes the
    # per-step in-kernel VPU cast on the bf16 path).
    if matmul_dtype is not None:
        w1 = w1.astype(matmul_dtype)
        w2 = w2.astype(matmul_dtype)
    fc2_lhs_dtype = matmul_dtype if matmul_dtype is not None else w2.dtype

    # tokens -> NHWC plane (channel-last so C maps to the 128-wide lane axis)
    x_nhwc = x.reshape(B, H, W, C_in)

    in_isz = jnp.dtype(x.dtype).itemsize
    w_isz = jnp.dtype(w1.dtype).itemsize

    # ---- generation-aware VMEM budget -----------------------------------------
    phys_vmem = _vmem_capacity_bytes()
    vmem_limit = max(32 * 1024 * 1024, phys_vmem - 16 * 1024 * 1024)  # headroom
    # Resident weights/biases, worst case double-buffered (fallback path),
    # small blocks padded to >= 8 sublanes.
    weight_bytes = 2 * ((C_in * C_hid + C_hid * C_out) * w_isz
                        + 8 * (3 * C_hid + C_out) * 4)

    def footprint(th):
        m_win = (th + 2) * W
        x_blk = 2 * m_win * C_in * in_isz            # input tile + halos, double-buffered
        out_blk = 2 * th * W * C_out * in_isz        # output tile, double-buffered
        hid = 7 * m_win * C_hid * 4                  # h/h_l/h_r (+reshapes) + acc, f32
        return x_blk + out_blk + hid + weight_bytes

    budget = int(vmem_limit * 0.85)
    th = _pick_row_tile(H, W, B, footprint, budget, row_block)
    n_row_tiles = H // th

    wdw9 = w_dw.reshape(9, C_hid)
    b1_2 = b1.reshape(1, C_hid)
    bdw2 = b_dw.reshape(1, C_hid)
    b2_2 = b2.reshape(1, C_out)

    kernel = _make_fused_mlp_kernel(W, C_in, C_hid, C_out, th, n_row_tiles,
                                    matmul_dtype, fc2_lhs_dtype, gelu_approx)

    def build_call(single_buffer_weights):
        def wspec(shape):
            nd = len(shape)
            imap = lambda b, i, _nd=nd: (0,) * _nd
            if single_buffer_weights:
                # Resident weights: single buffer halves their VMEM footprint.
                return pl.BlockSpec(shape, imap, pipeline_mode=pl.Buffered(1))
            return pl.BlockSpec(shape, imap)

        in_specs = [
            # 1-row top halo (clamped at the image border, zeroed in-kernel)
            pl.BlockSpec((1, 1, W, C_in),
                         lambda b, i: (b, jnp.maximum(i * th - 1, 0), 0, 0)),
            # the th rows of this tile
            pl.BlockSpec((1, th, W, C_in), lambda b, i: (b, i, 0, 0)),
            # 1-row bottom halo (clamped)
            pl.BlockSpec((1, 1, W, C_in),
                         lambda b, i: (b, jnp.minimum(i * th + th, H - 1), 0, 0)),
            # weights / biases: constant index maps -> VMEM-resident across steps
            wspec((C_in, C_hid)),
            wspec((1, C_hid)),
            wspec((9, C_hid)),
            wspec((1, C_hid)),
            wspec((C_hid, C_out)),
            wspec((1, C_out)),
        ]
        return pl.pallas_call(
            kernel,
            out_shape=jax.ShapeDtypeStruct((B, H, W, C_out), x.dtype),
            grid=(B, n_row_tiles),
            in_specs=in_specs,
            out_specs=pl.BlockSpec((1, th, W, C_out), lambda b, i: (b, i, 0, 0)),
            compiler_params=pltpu.CompilerParams(
                dimension_semantics=("parallel", "parallel"),
                vmem_limit_bytes=int(vmem_limit),
            ),
        )

    args = (x_nhwc, x_nhwc, x_nhwc, w1, b1_2, wdw9, bdw2, w2, b2_2)
    try:
        out_nhwc = jax.block_until_ready(build_call(True)(*args))
    except Exception:
        # pipeline_mode / pl.Buffered(1) unsupported on this jax version:
        # fall back to default double-buffered weight blocks (same numerics).
        out_nhwc = build_call(False)(*args)

    return out_nhwc.reshape(B, N, C_out)


# -----------------------------------------------------------------------------
# Pure-JAX reference (mirrors the PyTorch Mlp.forward, drop=0) and init
# -----------------------------------------------------------------------------
def mlp_reference(x, H, W, params):
    B, N, C_in = x.shape
    hp = jnp.matmul(x, params["w1"], precision=lax.Precision.HIGHEST) + params["b1"]
    C_hid = hp.shape[-1]
    h = hp.reshape(B, H, W, C_hid)
    h_pad = jnp.pad(h, ((0, 0), (1, 1), (1, 1), (0, 0)))
    conv = jnp.zeros_like(h)
    for ky in range(3):
        for kx in range(3):
            conv = conv + h_pad[:, ky:ky + H, kx:kx + W, :] * params["w_dw"][ky, kx]
    conv = conv + params["b_dw"]
    act = jax.nn.gelu(conv, approximate=False).reshape(B, N, C_hid)
    return jnp.matmul(act, params["w2"], precision=lax.Precision.HIGHEST) + params["b2"]


def init_params(key, in_features, hidden_features, out_features, dtype=jnp.float32):
    k1, k2, k3, k4, k5, k6 = jax.random.split(key, 6)
    bnd1 = 1.0 / math.sqrt(in_features)
    bnd_dw = 1.0 / 3.0              # depthwise: fan_in = 1 * 3 * 3
    bnd2 = 1.0 / math.sqrt(hidden_features)
    return {
        "w1": jax.random.uniform(k1, (in_features, hidden_features), dtype, -bnd1, bnd1),
        "b1": jax.random.uniform(k2, (hidden_features,), dtype, -bnd1, bnd1),
        "w_dw": jax.random.uniform(k3, (3, 3, hidden_features), dtype, -bnd_dw, bnd_dw),
        "b_dw": jax.random.uniform(k4, (hidden_features,), dtype, -bnd_dw, bnd_dw),
        "w2": jax.random.uniform(k5, (hidden_features, out_features), dtype, -bnd2, bnd2),
        "b2": jax.random.uniform(k6, (out_features,), dtype, -bnd2, bnd2),
    }


if __name__ == "__main__":
    key = jax.random.PRNGKey(0)
    B, H, W = 2, 8, 8
    in_features = 32
    hidden_features = 4 * in_features          # mlp_ratio = 4 as in the model
    out_features = in_features
    N = H * W

    kx, kp = jax.random.split(key)
    x = jax.random.normal(kx, (B, N, in_features), dtype=jnp.float32)
    params = init_params(kp, in_features, hidden_features, out_features)

    ref = mlp_reference(x, H, W, params)

    # Exact path; row_block=4 forces grid (B, 2) to exercise the halo handling.
    out = mlp_forward(x, H, W, params, row_block=4)
    out = jax.block_until_ready(out)
    assert out.shape == (B, N, out_features)
    err = float(jnp.max(jnp.abs(out - ref)))
    assert jnp.allclose(out, ref, atol=2e-2, rtol=2e-2), f"max|err|={err}"

    # Fast path: auto tile size, bf16 MXU operands (f32 accum), tanh GELU (EUP).
    out_fast = mlp_forward(x, H, W, params,
                           matmul_dtype=jnp.bfloat16, gelu_approx=True)
    out_fast = jax.block_until_ready(out_fast)
    assert out_fast.shape == (B, N, out_features)
    assert bool(jnp.all(jnp.isfinite(out_fast)))
    err_fast = float(jnp.max(jnp.abs(out_fast - ref)))
    assert err_fast < 0.25, f"fast-path max|err|={err_fast}"

    print("KERNEL_OK")
</pallas_src>

<mosaic_0001>
module attributes {stable_mosaic.version = 11 : i64} {
  func.func @kernel(%arg0: i32, %arg1: i32, %arg2: memref<1x1x8x32xf32, #tpu.memory_space<vmem>>, %arg3: memref<1x4x8x32xf32, #tpu.memory_space<vmem>>, %arg4: memref<1x1x8x32xf32, #tpu.memory_space<vmem>>, %arg5: memref<32x128xf32, #tpu.memory_space<vmem>>, %arg6: memref<1x128xf32, #tpu.memory_space<vmem>>, %arg7: memref<9x128xf32, #tpu.memory_space<vmem>>, %arg8: memref<1x128xf32, #tpu.memory_space<vmem>>, %arg9: memref<128x32xf32, #tpu.memory_space<vmem>>, %arg10: memref<1x32xf32, #tpu.memory_space<vmem>>, %arg11: memref<1x4x8x32xf32, #tpu.memory_space<vmem>>) attributes {dimension_semantics = [#tpu.dimension_semantics<parallel>, #tpu.dimension_semantics<parallel>], iteration_bounds = array<i64: 2, 2>, scalar_prefetch = 0 : i64, scratch_operands = 0 : i64, tpu.core_type = #tpu.core_type<tc>, window_params = [{transform_indices = @transform_0, window_bounds = array<i64: 1, 1, 8, 32>}, {transform_indices = @transform_1, window_bounds = array<i64: 1, 4, 8, 32>}, {transform_indices = @transform_2, window_bounds = array<i64: 1, 1, 8, 32>}, {pipeline_mode = #tpu.pipeline_mode<synchronous>, transform_indices = @transform_3, window_bounds = array<i64: 32, 128>}, {pipeline_mode = #tpu.pipeline_mode<synchronous>, transform_indices = @transform_4, window_bounds = array<i64: 1, 128>}, {pipeline_mode = #tpu.pipeline_mode<synchronous>, transform_indices = @transform_5, window_bounds = array<i64: 9, 128>}, {pipeline_mode = #tpu.pipeline_mode<synchronous>, transform_indices = @transform_6, window_bounds = array<i64: 1, 128>}, {pipeline_mode = #tpu.pipeline_mode<synchronous>, transform_indices = @transform_7, window_bounds = array<i64: 128, 32>}, {pipeline_mode = #tpu.pipeline_mode<synchronous>, transform_indices = @transform_8, window_bounds = array<i64: 1, 32>}, {transform_indices = @transform_9, window_bounds = array<i64: 1, 4, 8, 32>}]} {
    %c0 = arith.constant 0 : index
    %c0_0 = arith.constant 0 : index
    %c0_1 = arith.constant 0 : index
    %c0_2 = arith.constant 0 : index
    %0 = vector.load %arg2[%c0, %c0_0, %c0_1, %c0_2] : memref<1x1x8x32xf32, #tpu.memory_space<vmem>>, vector<1x1x8x32xf32>
    %1 = vector.shape_cast %0 : vector<1x1x8x32xf32> to vector<1x8x32xf32>
    %c0_3 = arith.constant 0 : index
    %c0_4 = arith.constant 0 : index
    %c0_5 = arith.constant 0 : index
    %c0_6 = arith.constant 0 : index
    %2 = vector.load %arg3[%c0_3, %c0_4, %c0_5, %c0_6] : memref<1x4x8x32xf32, #tpu.memory_space<vmem>>, vector<1x4x8x32xf32>
    %3 = vector.shape_cast %2 : vector<1x4x8x32xf32> to vector<4x8x32xf32>
    %c0_7 = arith.constant 0 : index
    %c0_8 = arith.constant 0 : index
    %c0_9 = arith.constant 0 : index
    %c0_10 = arith.constant 0 : index
    %4 = vector.load %arg4[%c0_7, %c0_8, %c0_9, %c0_10] : memref<1x1x8x32xf32, #tpu.memory_space<vmem>>, vector<1x1x8x32xf32>
    %5 = vector.shape_cast %4 : vector<1x1x8x32xf32> to vector<1x8x32xf32>
    %6 = tpu.concatenate %1, %3, %5 in 0 : vector<1x8x32xf32>, vector<4x8x32xf32>, vector<1x8x32xf32> -> vector<6x8x32xf32>
    %7 = vector.shape_cast %6 : vector<6x8x32xf32> to vector<48x32xf32>
    %c0_11 = arith.constant 0 : index
    %c0_12 = arith.constant 0 : index
    %8 = vector.load %arg5[%c0_11, %c0_12] : memref<32x128xf32, #tpu.memory_space<vmem>>, vector<32x128xf32>
    %cst = arith.constant dense<0.000000e+00> : vector<48x128xf32>
    %9 = tpu.matmul %7, %8, %cst {dimension_numbers = #tpu.dot_dimension_numbers<[1], [0], [0], [1], [0, 0, 1, 1], [], []>} : vector<48x32xf32>, vector<32x128xf32>, vector<48x128xf32> -> vector<48x128xf32>
    %c0_13 = arith.constant 0 : index
    %c0_14 = arith.constant 0 : index
    %10 = vector.load %arg6[%c0_13, %c0_14] : memref<1x128xf32, #tpu.memory_space<vmem>>, vector<1x128xf32>
    %11 = vector.broadcast %10 : vector<1x128xf32> to vector<48x128xf32>
    %12 = arith.addf %9, %11 : vector<48x128xf32>
    %13 = tpu.iota {dimensions = array<i32: 0>} : vector<48x1xi32>
    %c8_i32 = arith.constant 8 : i32
    %14 = vector.broadcast %c8_i32 : i32 to vector<48x1xi32>
    %15 = arith.cmpi sge, %13, %14 : vector<48x1xi32>
    %c0_i32 = arith.constant 0 : i32
    %16 = arith.cmpi sgt, %arg1, %c0_i32 : i32
    %17 = vector.broadcast %16 : i1 to vector<48x1xi1>
    %18 = arith.ori %15, %17 : vector<48x1xi1>
    %c40_i32 = arith.constant 40 : i32
    %19 = vector.broadcast %c40_i32 : i32 to vector<48x1xi32>
    %20 = arith.cmpi slt, %13, %19 : vector<48x1xi32>
    %c1_i32 = arith.constant 1 : i32
    %21 = arith.cmpi slt, %arg1, %c1_i32 : i32
    %22 = vector.broadcast %21 : i1 to vector<48x1xi1>
    %23 = arith.ori %20, %22 : vector<48x1xi1>
    %24 = arith.andi %18, %23 : vector<48x1xi1>
    %cst_15 = arith.constant 0.000000e+00 : f32
    %25 = vector.shape_cast %24 : vector<48x1xi1> to vector<48x1xi1>
    %26 = vector.broadcast %25 : vector<48x1xi1> to vector<48x128xi1>
    %27 = vector.broadcast %cst_15 : f32 to vector<48x128xf32>
    %28 = arith.select %26, %12, %27 : vector<48x128xi1>, vector<48x128xf32>
    %c8_i32_16 = arith.constant 8 : i32
    %c0_i32_17 = arith.constant 0 : i32
    %29 = arith.cmpi eq, %c8_i32_16, %c0_i32_17 : i32
    %c1_i32_18 = arith.constant 1 : i32
    %30 = arith.select %29, %c1_i32_18, %c8_i32_16 : i32
    %31 = vector.broadcast %30 : i32 to vector<48x1xi32>
    %32 = arith.remsi %13, %31 : vector<48x1xi32>
    %c0_i32_19 = arith.constant 0 : i32
    %33 = vector.broadcast %c0_i32_19 : i32 to vector<48x1xi32>
    %34 = arith.cmpi ne, %32, %33 : vector<48x1xi32>
    %c0_i32_20 = arith.constant 0 : i32
    %35 = vector.broadcast %c0_i32_20 : i32 to vector<48x1xi32>
    %36 = arith.cmpi slt, %32, %35 : vector<48x1xi32>
    %c0_i32_21 = arith.constant 0 : i32
    %37 = arith.cmpi slt, %30, %c0_i32_21 : i32
    %38 = vector.broadcast %37 : i1 to vector<48x1xi1>
    %39 = vector.broadcast %38 : vector<48x1xi1> to vector<48x1xi1>
    %40 = arith.xori %36, %39 : vector<48x1xi1>
    %41 = arith.andi %40, %34 : vector<48x1xi1>
    %42 = vector.broadcast %30 : i32 to vector<48x1xi32>
    %43 = arith.addi %32, %42 : vector<48x1xi32>
    %44 = arith.select %41, %43, %32 : vector<48x1xi1>, vector<48x1xi32>
    %c0_i32_22 = arith.constant 0 : i32
    %45 = vector.broadcast %c0_i32_22 : i32 to vector<48x1xi32>
    %46 = arith.cmpi eq, %44, %45 : vector<48x1xi32>
    %c1_i32_23 = arith.constant 1 : i32
    %47 = tpu.dynamic_rotate %28 by %c1_i32_23 dim 0 : vector<48x128xf32>, i32 -> vector<48x128xf32>
    %cst_24 = arith.constant 0.000000e+00 : f32
    %48 = vector.shape_cast %46 : vector<48x1xi1> to vector<48x1xi1>
    %49 = vector.broadcast %48 : vector<48x1xi1> to vector<48x128xi1>
    %50 = vector.broadcast %cst_24 : f32 to vector<48x128xf32>
    %51 = arith.select %49, %50, %47 : vector<48x128xi1>, vector<48x128xf32>
    %c7_i32 = arith.constant 7 : i32
    %52 = vector.broadcast %c7_i32 : i32 to vector<48x1xi32>
    %53 = arith.cmpi eq, %44, %52 : vector<48x1xi32>
    %c47_i32 = arith.constant 47 : i32
    %54 = tpu.dynamic_rotate %28 by %c47_i32 dim 0 : vector<48x128xf32>, i32 -> vector<48x128xf32>
    %cst_25 = arith.constant 0.000000e+00 : f32
    %55 = vector.shape_cast %53 : vector<48x1xi1> to vector<48x1xi1>
    %56 = vector.broadcast %55 : vector<48x1xi1> to vector<48x128xi1>
    %57 = vector.broadcast %cst_25 : f32 to vector<48x128xf32>
    %58 = arith.select %56, %57, %54 : vector<48x128xi1>, vector<48x128xf32>
    %59 = vector.shape_cast %28 : vector<48x128xf32> to vector<6x8x128xf32>
    %60 = vector.shape_cast %51 : vector<48x128xf32> to vector<6x8x128xf32>
    %61 = vector.shape_cast %58 : vector<48x128xf32> to vector<6x8x128xf32>
    %c0_26 = arith.constant 0 : index
    %c0_27 = arith.constant 0 : index
    %62 = vector.load %arg7[%c0_26, %c0_27] : memref<9x128xf32, #tpu.memory_space<vmem>>, vector<9x128xf32>
    %63 = vector.extract_strided_slice %60 {offsets = [0, 0, 0], sizes = [4, 8, 128], strides = [1, 1, 1]} : vector<6x8x128xf32> to vector<4x8x128xf32>
    %64 = vector.extract_strided_slice %62 {offsets = [0, 0], sizes = [1, 128], strides = [1, 1]} : vector<9x128xf32> to vector<1x128xf32>
    %65 = vector.shape_cast %64 : vector<1x128xf32> to vector<128xf32>
    %66 = vector.shape_cast %65 : vector<128xf32> to vector<1x1x128xf32>
    %67 = vector.broadcast %66 : vector<1x1x128xf32> to vector<4x8x128xf32>
    %68 = arith.mulf %63, %67 : vector<4x8x128xf32>
    %69 = vector.extract_strided_slice %59 {offsets = [0, 0, 0], sizes = [4, 8, 128], strides = [1, 1, 1]} : vector<6x8x128xf32> to vector<4x8x128xf32>
    %70 = vector.extract_strided_slice %62 {offsets = [1, 0], sizes = [1, 128], strides = [1, 1]} : vector<9x128xf32> to vector<1x128xf32>
    %71 = vector.shape_cast %70 : vector<1x128xf32> to vector<128xf32>
    %72 = vector.shape_cast %71 : vector<128xf32> to vector<1x1x128xf32>
    %73 = vector.broadcast %72 : vector<1x1x128xf32> to vector<4x8x128xf32>
    %74 = arith.mulf %69, %73 : vector<4x8x128xf32>
    %75 = arith.addf %68, %74 : vector<4x8x128xf32>
    %76 = vector.extract_strided_slice %61 {offsets = [0, 0, 0], sizes = [4, 8, 128], strides = [1, 1, 1]} : vector<6x8x128xf32> to vector<4x8x128xf32>
    %77 = vector.extract_strided_slice %62 {offsets = [2, 0], sizes = [1, 128], strides = [1, 1]} : vector<9x128xf32> to vector<1x128xf32>
    %78 = vector.shape_cast %77 : vector<1x128xf32> to vector<128xf32>
    %79 = vector.shape_cast %78 : vector<128xf32> to vector<1x1x128xf32>
    %80 = vector.broadcast %79 : vector<1x1x128xf32> to vector<4x8x128xf32>
    %81 = arith.mulf %76, %80 : vector<4x8x128xf32>
    %82 = arith.addf %75, %81 : vector<4x8x128xf32>
    %83 = vector.extract_strided_slice %60 {offsets = [1, 0, 0], sizes = [4, 8, 128], strides = [1, 1, 1]} : vector<6x8x128xf32> to vector<4x8x128xf32>
    %84 = vector.extract_strided_slice %62 {offsets = [3, 0], sizes = [1, 128], strides = [1, 1]} : vector<9x128xf32> to vector<1x128xf32>
    %85 = vector.shape_cast %84 : vector<1x128xf32> to vector<128xf32>
    %86 = vector.shape_cast %85 : vector<128xf32> to vector<1x1x128xf32>
    %87 = vector.broadcast %86 : vector<1x1x128xf32> to vector<4x8x128xf32>
    %88 = arith.mulf %83, %87 : vector<4x8x128xf32>
    %89 = arith.addf %82, %88 : vector<4x8x128xf32>
    %90 = vector.extract_strided_slice %59 {offsets = [1, 0, 0], sizes = [4, 8, 128], strides = [1, 1, 1]} : vector<6x8x128xf32> to vector<4x8x128xf32>
    %91 = vector.extract_strided_slice %62 {offsets = [4, 0], sizes = [1, 128], strides = [1, 1]} : vector<9x128xf32> to vector<1x128xf32>
    %92 = vector.shape_cast %91 : vector<1x128xf32> to vector<128xf32>
    %93 = vector.shape_cast %92 : vector<128xf32> to vector<1x1x128xf32>
    %94 = vector.broadcast %93 : vector<1x1x128xf32> to vector<4x8x128xf32>
    %95 = arith.mulf %90, %94 : vector<4x8x128xf32>
    %96 = arith.addf %89, %95 : vector<4x8x128xf32>
    %97 = vector.extract_strided_slice %61 {offsets = [1, 0, 0], sizes = [4, 8, 128], strides = [1, 1, 1]} : vector<6x8x128xf32> to vector<4x8x128xf32>
    %98 = vector.extract_strided_slice %62 {offsets = [5, 0], sizes = [1, 128], strides = [1, 1]} : vector<9x128xf32> to vector<1x128xf32>
    %99 = vector.shape_cast %98 : vector<1x128xf32> to vector<128xf32>
    %100 = vector.shape_cast %99 : vector<128xf32> to vector<1x1x128xf32>
    %101 = vector.broadcast %100 : vector<1x1x128xf32> to vector<4x8x128xf32>
    %102 = arith.mulf %97, %101 : vector<4x8x128xf32>
    %103 = arith.addf %96, %102 : vector<4x8x128xf32>
    %104 = vector.extract_strided_slice %60 {offsets = [2, 0, 0], sizes = [4, 8, 128], strides = [1, 1, 1]} : vector<6x8x128xf32> to vector<4x8x128xf32>
    %105 = vector.extract_strided_slice %62 {offsets = [6, 0], sizes = [1, 128], strides = [1, 1]} : vector<9x128xf32> to vector<1x128xf32>
    %106 = vector.shape_cast %105 : vector<1x128xf32> to vector<128xf32>
    %107 = vector.shape_cast %106 : vector<128xf32> to vector<1x1x128xf32>
    %108 = vector.broadcast %107 : vector<1x1x128xf32> to vector<4x8x128xf32>
    %109 = arith.mulf %104, %108 : vector<4x8x128xf32>
    %110 = arith.addf %103, %109 : vector<4x8x128xf32>
    %111 = vector.extract_strided_slice %59 {offsets = [2, 0, 0], sizes = [4, 8, 128], strides = [1, 1, 1]} : vector<6x8x128xf32> to vector<4x8x128xf32>
    %112 = vector.extract_strided_slice %62 {offsets = [7, 0], sizes = [1, 128], strides = [1, 1]} : vector<9x128xf32> to vector<1x128xf32>
    %113 = vector.shape_cast %112 : vector<1x128xf32> to vector<128xf32>
    %114 = vector.shape_cast %113 : vector<128xf32> to vector<1x1x128xf32>
    %115 = vector.broadcast %114 : vector<1x1x128xf32> to vector<4x8x128xf32>
    %116 = arith.mulf %111, %115 : vector<4x8x128xf32>
    %117 = arith.addf %110, %116 : vector<4x8x128xf32>
    %118 = vector.extract_strided_slice %61 {offsets = [2, 0, 0], sizes = [4, 8, 128], strides = [1, 1, 1]} : vector<6x8x128xf32> to vector<4x8x128xf32>
    %119 = vector.extract_strided_slice %62 {offsets = [8, 0], sizes = [1, 128], strides = [1, 1]} : vector<9x128xf32> to vector<1x128xf32>
    %120 = vector.shape_cast %119 : vector<1x128xf32> to vector<128xf32>
    %121 = vector.shape_cast %120 : vector<128xf32> to vector<1x1x128xf32>
    %122 = vector.broadcast %121 : vector<1x1x128xf32> to vector<4x8x128xf32>
    %123 = arith.mulf %118, %122 : vector<4x8x128xf32>
    %124 = arith.addf %117, %123 : vector<4x8x128xf32>
    %c0_28 = arith.constant 0 : index
    %c0_29 = arith.constant 0 : index
    %125 = vector.load %arg8[%c0_28, %c0_29] : memref<1x128xf32, #tpu.memory_space<vmem>>, vector<1x128xf32>
    %126 = vector.shape_cast %125 : vector<1x128xf32> to vector<1x1x128xf32>
    %127 = vector.broadcast %126 : vector<1x1x128xf32> to vector<4x8x128xf32>
    %128 = arith.addf %124, %127 : vector<4x8x128xf32>
    %cst_30 = arith.constant 5.000000e-01 : f32
    %129 = vector.broadcast %cst_30 : f32 to vector<4x8x128xf32>
    %130 = arith.mulf %129, %128 : vector<4x8x128xf32>
    %cst_31 = arith.constant 0.707106769 : f32
    %131 = vector.broadcast %cst_31 : f32 to vector<4x8x128xf32>
    %132 = arith.mulf %128, %131 : vector<4x8x128xf32>
    %133 = math.erf %132 : vector<4x8x128xf32>
    %cst_32 = arith.constant 1.000000e+00 : f32
    %134 = vector.broadcast %cst_32 : f32 to vector<4x8x128xf32>
    %135 = arith.addf %134, %133 : vector<4x8x128xf32>
    %136 = arith.mulf %130, %135 : vector<4x8x128xf32>
    %137 = vector.shape_cast %136 : vector<4x8x128xf32> to vector<32x128xf32>
    %c0_33 = arith.constant 0 : index
    %c0_34 = arith.constant 0 : index
    %138 = vector.load %arg9[%c0_33, %c0_34] : memref<128x32xf32, #tpu.memory_space<vmem>>, vector<128x32xf32>
    %cst_35 = arith.constant dense<0.000000e+00> : vector<32x32xf32>
    %139 = tpu.matmul %137, %138, %cst_35 {dimension_numbers = #tpu.dot_dimension_numbers<[1], [0], [0], [1], [0, 0, 1, 1], [], []>} : vector<32x128xf32>, vector<128x32xf32>, vector<32x32xf32> -> vector<32x32xf32>
    %c0_36 = arith.constant 0 : index
    %c0_37 = arith.constant 0 : index
    %140 = vector.load %arg10[%c0_36, %c0_37] : memref<1x32xf32, #tpu.memory_space<vmem>>, vector<1x32xf32>
    %141 = vector.broadcast %140 : vector<1x32xf32> to vector<32x32xf32>
    %142 = arith.addf %139, %141 : vector<32x32xf32>
    %143 = vector.shape_cast %142 : vector<32x32xf32> to vector<4x8x32xf32>
    %c0_38 = arith.constant 0 : index
    %c0_39 = arith.constant 0 : index
    %c0_40 = arith.constant 0 : index
    %c0_41 = arith.constant 0 : index
    %144 = vector.load %arg11[%c0_38, %c0_39, %c0_40, %c0_41] : memref<1x4x8x32xf32, #tpu.memory_space<vmem>>, vector<1x4x8x32xf32>
    %145 = vector.shape_cast %144 : vector<1x4x8x32xf32> to vector<4x8x32xf32>
    %146 = vector.shape_cast %143 : vector<4x8x32xf32> to vector<1x4x8x32xf32>
    tpu.vector_store %arg11[%c0_38, %c0_39, %c0_40, %c0_41], %146 {strides = array<i32>} : memref<1x4x8x32xf32, #tpu.memory_space<vmem>>, vector<1x4x8x32xf32>,
    return
  }
  func.func @transform_0(%arg0: i32, %arg1: i32) -> (i32, i32, i32, i32) {
    %c4_i32 = arith.constant 4 : i32
    %0 = arith.muli %arg1, %c4_i32 : i32
    %c1_i32 = arith.constant 1 : i32
    %1 = arith.subi %0, %c1_i32 : i32
    %c0_i32 = arith.constant 0 : i32
    %2 = arith.maxsi %1, %c0_i32 : i32
    %c0_i32_0 = arith.constant 0 : i32
    %c0_i32_1 = arith.constant 0 : i32
    %c0_i32_2 = arith.constant 0 : i32
    return %arg0, %2, %c0_i32_0, %c0_i32_1 : i32, i32, i32, i32
  }
  func.func @transform_1(%arg0: i32, %arg1: i32) -> (i32, i32, i32, i32) {
    %c0_i32 = arith.constant 0 : i32
    %c0_i32_0 = arith.constant 0 : i32
    %c0_i32_1 = arith.constant 0 : i32
    return %arg0, %arg1, %c0_i32, %c0_i32_0 : i32, i32, i32, i32
  }
  func.func @transform_2(%arg0: i32, %arg1: i32) -> (i32, i32, i32, i32) {
    %c4_i32 = arith.constant 4 : i32
    %0 = arith.muli %arg1, %c4_i32 : i32
    %c4_i32_0 = arith.constant 4 : i32
    %1 = arith.addi %0, %c4_i32_0 : i32
    %c7_i32 = arith.constant 7 : i32
    %2 = arith.minsi %1, %c7_i32 : i32
    %c0_i32 = arith.constant 0 : i32
    %c0_i32_1 = arith.constant 0 : i32
    %c0_i32_2 = arith.constant 0 : i32
    return %arg0, %2, %c0_i32, %c0_i32_1 : i32, i32, i32, i32
  }
  func.func @transform_3(%arg0: i32, %arg1: i32) -> (i32, i32) {
    %c0_i32 = arith.constant 0 : i32
    %c0_i32_0 = arith.constant 0 : i32
    %c0_i32_1 = arith.constant 0 : i32
    return %c0_i32, %c0_i32_0 : i32, i32
  }
  func.func @transform_4(%arg0: i32, %arg1: i32) -> (i32, i32) {
    %c0_i32 = arith.constant 0 : i32
    %c0_i32_0 = arith.constant 0 : i32
    %c0_i32_1 = arith.constant 0 : i32
    return %c0_i32, %c0_i32_0 : i32, i32
  }
  func.func @transform_5(%arg0: i32, %arg1: i32) -> (i32, i32) {
    %c0_i32 = arith.constant 0 : i32
    %c0_i32_0 = arith.constant 0 : i32
    %c0_i32_1 = arith.constant 0 : i32
    return %c0_i32, %c0_i32_0 : i32, i32
  }
  func.func @transform_6(%arg0: i32, %arg1: i32) -> (i32, i32) {
    %c0_i32 = arith.constant 0 : i32
    %c0_i32_0 = arith.constant 0 : i32
    %c0_i32_1 = arith.constant 0 : i32
    return %c0_i32, %c0_i32_0 : i32, i32
  }
  func.func @transform_7(%arg0: i32, %arg1: i32) -> (i32, i32) {
    %c0_i32 = arith.constant 0 : i32
    %c0_i32_0 = arith.constant 0 : i32
    %c0_i32_1 = arith.constant 0 : i32
    return %c0_i32, %c0_i32_0 : i32, i32
  }
  func.func @transform_8(%arg0: i32, %arg1: i32) -> (i32, i32) {
    %c0_i32 = arith.constant 0 : i32
    %c0_i32_0 = arith.constant 0 : i32
    %c0_i32_1 = arith.constant 0 : i32
    return %c0_i32, %c0_i32_0 : i32, i32
  }
  func.func @transform_9(%arg0: i32, %arg1: i32) -> (i32, i32, i32, i32) {
    %c0_i32 = arith.constant 0 : i32
    %c0_i32_0 = arith.constant 0 : i32
    %c0_i32_1 = arith.constant 0 : i32
    return %arg0, %arg1, %c0_i32, %c0_i32_0 : i32, i32, i32, i32
  }
}

module attributes {stable_mosaic.version = 11 : i64} {
  func.func @kernel(%arg0: i32, %arg1: i32, %arg2: memref<1x1x8x32xf32, #tpu.memory_space<vmem>>, %arg3: memref<1x4x8x32xf32, #tpu.memory_space<vmem>>, %arg4: memref<1x1x8x32xf32, #tpu.memory_space<vmem>>, %arg5: memref<32x128xf32, #tpu.memory_space<vmem>>, %arg6: memref<1x128xf32, #tpu.memory_space<vmem>>, %arg7: memref<9x128xf32, #tpu.memory_space<vmem>>, %arg8: memref<1x128xf32, #tpu.memory_space<vmem>>, %arg9: memref<128x32xf32, #tpu.memory_space<vmem>>, %arg10: memref<1x32xf32, #tpu.memory_space<vmem>>, %arg11: memref<1x4x8x32xf32, #tpu.memory_space<vmem>>) attributes {dimension_semantics = [#tpu.dimension_semantics<parallel>, #tpu.dimension_semantics<parallel>], iteration_bounds = array<i64: 2, 2>, scalar_prefetch = 0 : i64, scratch_operands = 0 : i64, tpu.core_type = #tpu.core_type<tc>, window_params = [{transform_indices = @transform_0, window_bounds = array<i64: 1, 1, 8, 32>}, {transform_indices = @transform_1, window_bounds = array<i64: 1, 4, 8, 32>}, {transform_indices = @transform_2, window_bounds = array<i64: 1, 1, 8, 32>}, {pipeline_mode = #tpu.pipeline_mode<synchronous>, transform_indices = @transform_3, window_bounds = array<i64: 32, 128>}, {pipeline_mode = #tpu.pipeline_mode<synchronous>, transform_indices = @transform_4, window_bounds = array<i64: 1, 128>}, {pipeline_mode = #tpu.pipeline_mode<synchronous>, transform_indices = @transform_5, window_bounds = array<i64: 9, 128>}, {pipeline_mode = #tpu.pipeline_mode<synchronous>, transform_indices = @transform_6, window_bounds = array<i64: 1, 128>}, {pipeline_mode = #tpu.pipeline_mode<synchronous>, transform_indices = @transform_7, window_bounds = array<i64: 128, 32>}, {pipeline_mode = #tpu.pipeline_mode<synchronous>, transform_indices = @transform_8, window_bounds = array<i64: 1, 32>}, {transform_indices = @transform_9, window_bounds = array<i64: 1, 4, 8, 32>}]} {
    %c0 = arith.constant 0 : index
    %c0_0 = arith.constant 0 : index
    %c0_1 = arith.constant 0 : index
    %c0_2 = arith.constant 0 : index
    %0 = vector.load %arg2[%c0, %c0_0, %c0_1, %c0_2] : memref<1x1x8x32xf32, #tpu.memory_space<vmem>>, vector<1x1x8x32xf32>
    %1 = vector.shape_cast %0 : vector<1x1x8x32xf32> to vector<1x8x32xf32>
    %c0_3 = arith.constant 0 : index
    %c0_4 = arith.constant 0 : index
    %c0_5 = arith.constant 0 : index
    %c0_6 = arith.constant 0 : index
    %2 = vector.load %arg3[%c0_3, %c0_4, %c0_5, %c0_6] : memref<1x4x8x32xf32, #tpu.memory_space<vmem>>, vector<1x4x8x32xf32>
    %3 = vector.shape_cast %2 : vector<1x4x8x32xf32> to vector<4x8x32xf32>
    %c0_7 = arith.constant 0 : index
    %c0_8 = arith.constant 0 : index
    %c0_9 = arith.constant 0 : index
    %c0_10 = arith.constant 0 : index
    %4 = vector.load %arg4[%c0_7, %c0_8, %c0_9, %c0_10] : memref<1x1x8x32xf32, #tpu.memory_space<vmem>>, vector<1x1x8x32xf32>
    %5 = vector.shape_cast %4 : vector<1x1x8x32xf32> to vector<1x8x32xf32>
    %6 = tpu.concatenate %1, %3, %5 in 0 : vector<1x8x32xf32>, vector<4x8x32xf32>, vector<1x8x32xf32> -> vector<6x8x32xf32>
    %7 = vector.shape_cast %6 : vector<6x8x32xf32> to vector<48x32xf32>
    %c0_11 = arith.constant 0 : index
    %c0_12 = arith.constant 0 : index
    %8 = vector.load %arg5[%c0_11, %c0_12] : memref<32x128xf32, #tpu.memory_space<vmem>>, vector<32x128xf32>
    %cst = arith.constant dense<0.000000e+00> : vector<48x128xf32>
    %9 = tpu.matmul %7, %8, %cst {dimension_numbers = #tpu.dot_dimension_numbers<[1], [0], [0], [1], [0, 0, 1, 1], [], []>} : vector<48x32xf32>, vector<32x128xf32>, vector<48x128xf32> -> vector<48x128xf32>
    %c0_13 = arith.constant 0 : index
    %c0_14 = arith.constant 0 : index
    %10 = vector.load %arg6[%c0_13, %c0_14] : memref<1x128xf32, #tpu.memory_space<vmem>>, vector<1x128xf32>
    %11 = vector.broadcast %10 : vector<1x128xf32> to vector<48x128xf32>
    %12 = arith.addf %9, %11 : vector<48x128xf32>
    %13 = tpu.iota {dimensions = array<i32: 0>} : vector<48x1xi32>
    %c8_i32 = arith.constant 8 : i32
    %14 = vector.broadcast %c8_i32 : i32 to vector<48x1xi32>
    %15 = arith.cmpi sge, %13, %14 : vector<48x1xi32>
    %c0_i32 = arith.constant 0 : i32
    %16 = arith.cmpi sgt, %arg1, %c0_i32 : i32
    %17 = vector.broadcast %16 : i1 to vector<48x1xi1>
    %18 = arith.ori %15, %17 : vector<48x1xi1>
    %c40_i32 = arith.constant 40 : i32
    %19 = vector.broadcast %c40_i32 : i32 to vector<48x1xi32>
    %20 = arith.cmpi slt, %13, %19 : vector<48x1xi32>
    %c1_i32 = arith.constant 1 : i32
    %21 = arith.cmpi slt, %arg1, %c1_i32 : i32
    %22 = vector.broadcast %21 : i1 to vector<48x1xi1>
    %23 = arith.ori %20, %22 : vector<48x1xi1>
    %24 = arith.andi %18, %23 : vector<48x1xi1>
    %cst_15 = arith.constant 0.000000e+00 : f32
    %25 = vector.shape_cast %24 : vector<48x1xi1> to vector<48x1xi1>
    %26 = vector.broadcast %25 : vector<48x1xi1> to vector<48x128xi1>
    %27 = vector.broadcast %cst_15 : f32 to vector<48x128xf32>
    %28 = arith.select %26, %12, %27 : vector<48x128xi1>, vector<48x128xf32>
    %c8_i32_16 = arith.constant 8 : i32
    %c0_i32_17 = arith.constant 0 : i32
    %29 = arith.cmpi eq, %c8_i32_16, %c0_i32_17 : i32
    %c1_i32_18 = arith.constant 1 : i32
    %30 = arith.select %29, %c1_i32_18, %c8_i32_16 : i32
    %31 = vector.broadcast %30 : i32 to vector<48x1xi32>
    %32 = arith.remsi %13, %31 : vector<48x1xi32>
    %c0_i32_19 = arith.constant 0 : i32
    %33 = vector.broadcast %c0_i32_19 : i32 to vector<48x1xi32>
    %34 = arith.cmpi ne, %32, %33 : vector<48x1xi32>
    %c0_i32_20 = arith.constant 0 : i32
    %35 = vector.broadcast %c0_i32_20 : i32 to vector<48x1xi32>
    %36 = arith.cmpi slt, %32, %35 : vector<48x1xi32>
    %c0_i32_21 = arith.constant 0 : i32
    %37 = arith.cmpi slt, %30, %c0_i32_21 : i32
    %38 = vector.broadcast %37 : i1 to vector<48x1xi1>
    %39 = vector.broadcast %38 : vector<48x1xi1> to vector<48x1xi1>
    %40 = arith.xori %36, %39 : vector<48x1xi1>
    %41 = arith.andi %40, %34 : vector<48x1xi1>
    %42 = vector.broadcast %30 : i32 to vector<48x1xi32>
    %43 = arith.addi %32, %42 : vector<48x1xi32>
    %44 = arith.select %41, %43, %32 : vector<48x1xi1>, vector<48x1xi32>
    %c0_i32_22 = arith.constant 0 : i32
    %45 = vector.broadcast %c0_i32_22 : i32 to vector<48x1xi32>
    %46 = arith.cmpi eq, %44, %45 : vector<48x1xi32>
    %c1_i32_23 = arith.constant 1 : i32
    %47 = tpu.dynamic_rotate %28 by %c1_i32_23 dim 0 : vector<48x128xf32>, i32 -> vector<48x128xf32>
    %cst_24 = arith.constant 0.000000e+00 : f32
    %48 = vector.shape_cast %46 : vector<48x1xi1> to vector<48x1xi1>
    %49 = vector.broadcast %48 : vector<48x1xi1> to vector<48x128xi1>
    %50 = vector.broadcast %cst_24 : f32 to vector<48x128xf32>
    %51 = arith.select %49, %50, %47 : vector<48x128xi1>, vector<48x128xf32>
    %c7_i32 = arith.constant 7 : i32
    %52 = vector.broadcast %c7_i32 : i32 to vector<48x1xi32>
    %53 = arith.cmpi eq, %44, %52 : vector<48x1xi32>
    %c47_i32 = arith.constant 47 : i32
    %54 = tpu.dynamic_rotate %28 by %c47_i32 dim 0 : vector<48x128xf32>, i32 -> vector<48x128xf32>
    %cst_25 = arith.constant 0.000000e+00 : f32
    %55 = vector.shape_cast %53 : vector<48x1xi1> to vector<48x1xi1>
    %56 = vector.broadcast %55 : vector<48x1xi1> to vector<48x128xi1>
    %57 = vector.broadcast %cst_25 : f32 to vector<48x128xf32>
    %58 = arith.select %56, %57, %54 : vector<48x128xi1>, vector<48x128xf32>
    %59 = vector.shape_cast %28 : vector<48x128xf32> to vector<6x8x128xf32>
    %60 = vector.shape_cast %51 : vector<48x128xf32> to vector<6x8x128xf32>
    %61 = vector.shape_cast %58 : vector<48x128xf32> to vector<6x8x128xf32>
    %c0_26 = arith.constant 0 : index
    %c0_27 = arith.constant 0 : index
    %62 = vector.load %arg7[%c0_26, %c0_27] : memref<9x128xf32, #tpu.memory_space<vmem>>, vector<9x128xf32>
    %63 = vector.extract_strided_slice %60 {offsets = [0, 0, 0], sizes = [4, 8, 128], strides = [1, 1, 1]} : vector<6x8x128xf32> to vector<4x8x128xf32>
    %64 = vector.extract_strided_slice %62 {offsets = [0, 0], sizes = [1, 128], strides = [1, 1]} : vector<9x128xf32> to vector<1x128xf32>
    %65 = vector.shape_cast %64 : vector<1x128xf32> to vector<128xf32>
    %66 = vector.shape_cast %65 : vector<128xf32> to vector<1x1x128xf32>
    %67 = vector.broadcast %66 : vector<1x1x128xf32> to vector<4x8x128xf32>
    %68 = arith.mulf %63, %67 : vector<4x8x128xf32>
    %69 = vector.extract_strided_slice %59 {offsets = [0, 0, 0], sizes = [4, 8, 128], strides = [1, 1, 1]} : vector<6x8x128xf32> to vector<4x8x128xf32>
    %70 = vector.extract_strided_slice %62 {offsets = [1, 0], sizes = [1, 128], strides = [1, 1]} : vector<9x128xf32> to vector<1x128xf32>
    %71 = vector.shape_cast %70 : vector<1x128xf32> to vector<128xf32>
    %72 = vector.shape_cast %71 : vector<128xf32> to vector<1x1x128xf32>
    %73 = vector.broadcast %72 : vector<1x1x128xf32> to vector<4x8x128xf32>
    %74 = arith.mulf %69, %73 : vector<4x8x128xf32>
    %75 = arith.addf %68, %74 : vector<4x8x128xf32>
    %76 = vector.extract_strided_slice %61 {offsets = [0, 0, 0], sizes = [4, 8, 128], strides = [1, 1, 1]} : vector<6x8x128xf32> to vector<4x8x128xf32>
    %77 = vector.extract_strided_slice %62 {offsets = [2, 0], sizes = [1, 128], strides = [1, 1]} : vector<9x128xf32> to vector<1x128xf32>
    %78 = vector.shape_cast %77 : vector<1x128xf32> to vector<128xf32>
    %79 = vector.shape_cast %78 : vector<128xf32> to vector<1x1x128xf32>
    %80 = vector.broadcast %79 : vector<1x1x128xf32> to vector<4x8x128xf32>
    %81 = arith.mulf %76, %80 : vector<4x8x128xf32>
    %82 = arith.addf %75, %81 : vector<4x8x128xf32>
    %83 = vector.extract_strided_slice %60 {offsets = [1, 0, 0], sizes = [4, 8, 128], strides = [1, 1, 1]} : vector<6x8x128xf32> to vector<4x8x128xf32>
    %84 = vector.extract_strided_slice %62 {offsets = [3, 0], sizes = [1, 128], strides = [1, 1]} : vector<9x128xf32> to vector<1x128xf32>
    %85 = vector.shape_cast %84 : vector<1x128xf32> to vector<128xf32>
    %86 = vector.shape_cast %85 : vector<128xf32> to vector<1x1x128xf32>
    %87 = vector.broadcast %86 : vector<1x1x128xf32> to vector<4x8x128xf32>
    %88 = arith.mulf %83, %87 : vector<4x8x128xf32>
    %89 = arith.addf %82, %88 : vector<4x8x128xf32>
    %90 = vector.extract_strided_slice %59 {offsets = [1, 0, 0], sizes = [4, 8, 128], strides = [1, 1, 1]} : vector<6x8x128xf32> to vector<4x8x128xf32>
    %91 = vector.extract_strided_slice %62 {offsets = [4, 0], sizes = [1, 128], strides = [1, 1]} : vector<9x128xf32> to vector<1x128xf32>
    %92 = vector.shape_cast %91 : vector<1x128xf32> to vector<128xf32>
    %93 = vector.shape_cast %92 : vector<128xf32> to vector<1x1x128xf32>
    %94 = vector.broadcast %93 : vector<1x1x128xf32> to vector<4x8x128xf32>
    %95 = arith.mulf %90, %94 : vector<4x8x128xf32>
    %96 = arith.addf %89, %95 : vector<4x8x128xf32>
    %97 = vector.extract_strided_slice %61 {offsets = [1, 0, 0], sizes = [4, 8, 128], strides = [1, 1, 1]} : vector<6x8x128xf32> to vector<4x8x128xf32>
    %98 = vector.extract_strided_slice %62 {offsets = [5, 0], sizes = [1, 128], strides = [1, 1]} : vector<9x128xf32> to vector<1x128xf32>
    %99 = vector.shape_cast %98 : vector<1x128xf32> to vector<128xf32>
    %100 = vector.shape_cast %99 : vector<128xf32> to vector<1x1x128xf32>
    %101 = vector.broadcast %100 : vector<1x1x128xf32> to vector<4x8x128xf32>
    %102 = arith.mulf %97, %101 : vector<4x8x128xf32>
    %103 = arith.addf %96, %102 : vector<4x8x128xf32>
    %104 = vector.extract_strided_slice %60 {offsets = [2, 0, 0], sizes = [4, 8, 128], strides = [1, 1, 1]} : vector<6x8x128xf32> to vector<4x8x128xf32>
    %105 = vector.extract_strided_slice %62 {offsets = [6, 0], sizes = [1, 128], strides = [1, 1]} : vector<9x128xf32> to vector<1x128xf32>
    %106 = vector.shape_cast %105 : vector<1x128xf32> to vector<128xf32>
    %107 = vector.shape_cast %106 : vector<128xf32> to vector<1x1x128xf32>
    %108 = vector.broadcast %107 : vector<1x1x128xf32> to vector<4x8x128xf32>
    %109 = arith.mulf %104, %108 : vector<4x8x128xf32>
    %110 = arith.addf %103, %109 : vector<4x8x128xf32>
    %111 = vector.extract_strided_slice %59 {offsets = [2, 0, 0], sizes = [4, 8, 128], strides = [1, 1, 1]} : vector<6x8x128xf32> to vector<4x8x128xf32>
    %112 = vector.extract_strided_slice %62 {offsets = [7, 0], sizes = [1, 128], strides = [1, 1]} : vector<9x128xf32> to vector<1x128xf32>
    %113 = vector.shape_cast %112 : vector<1x128xf32> to vector<128xf32>
    %114 = vector.shape_cast %113 : vector<128xf32> to vector<1x1x128xf32>
    %115 = vector.broadcast %114 : vector<1x1x128xf32> to vector<4x8x128xf32>
    %116 = arith.mulf %111, %115 : vector<4x8x128xf32>
    %117 = arith.addf %110, %116 : vector<4x8x128xf32>
    %118 = vector.extract_strided_slice %61 {offsets = [2, 0, 0], sizes = [4, 8, 128], strides = [1, 1, 1]} : vector<6x8x128xf32> to vector<4x8x128xf32>
    %119 = vector.extract_strided_slice %62 {offsets = [8, 0], sizes = [1, 128], strides = [1, 1]} : vector<9x128xf32> to vector<1x128xf32>
    %120 = vector.shape_cast %119 : vector<1x128xf32> to vector<128xf32>
    %121 = vector.shape_cast %120 : vector<128xf32> to vector<1x1x128xf32>
    %122 = vector.broadcast %121 : vector<1x1x128xf32> to vector<4x8x128xf32>
    %123 = arith.mulf %118, %122 : vector<4x8x128xf32>
    %124 = arith.addf %117, %123 : vector<4x8x128xf32>
    %c0_28 = arith.constant 0 : index
    %c0_29 = arith.constant 0 : index
    %125 = vector.load %arg8[%c0_28, %c0_29] : memref<1x128xf32, #tpu.memory_space<vmem>>, vector<1x128xf32>
    %126 = vector.shape_cast %125 : vector<1x128xf32> to vector<1x1x128xf32>
    %127 = vector.broadcast %126 : vector<1x1x128xf32> to vector<4x8x128xf32>
    %128 = arith.addf %124, %127 : vector<4x8x128xf32>
    %cst_30 = arith.constant 5.000000e-01 : f32
    %129 = vector.broadcast %cst_30 : f32 to vector<4x8x128xf32>
    %130 = arith.mulf %129, %128 : vector<4x8x128xf32>
    %cst_31 = arith.constant 0.707106769 : f32
    %131 = vector.broadcast %cst_31 : f32 to vector<4x8x128xf32>
    %132 = arith.mulf %128, %131 : vector<4x8x128xf32>
    %133 = math.erf %132 : vector<4x8x128xf32>
    %cst_32 = arith.constant 1.000000e+00 : f32
    %134 = vector.broadcast %cst_32 : f32 to vector<4x8x128xf32>
    %135 = arith.addf %134, %133 : vector<4x8x128xf32>
    %136 = arith.mulf %130, %135 : vector<4x8x128xf32>
    %137 = vector.shape_cast %136 : vector<4x8x128xf32> to vector<32x128xf32>
    %c0_33 = arith.constant 0 : index
    %c0_34 = arith.constant 0 : index
    %138 = vector.load %arg9[%c0_33, %c0_34] : memref<128x32xf32, #tpu.memory_space<vmem>>, vector<128x32xf32>
    %cst_35 = arith.constant dense<0.000000e+00> : vector<32x32xf32>
    %139 = tpu.matmul %137, %138, %cst_35 {dimension_numbers = #tpu.dot_dimension_numbers<[1], [0], [0], [1], [0, 0, 1, 1], [], []>} : vector<32x128xf32>, vector<128x32xf32>, vector<32x32xf32> -> vector<32x32xf32>
    %c0_36 = arith.constant 0 : index
    %c0_37 = arith.constant 0 : index
    %140 = vector.load %arg10[%c0_36, %c0_37] : memref<1x32xf32, #tpu.memory_space<vmem>>, vector<1x32xf32>
    %141 = vector.broadcast %140 : vector<1x32xf32> to vector<32x32xf32>
    %142 = arith.addf %139, %141 : vector<32x32xf32>
    %143 = vector.shape_cast %142 : vector<32x32xf32> to vector<4x8x32xf32>
    %c0_38 = arith.constant 0 : index
    %c0_39 = arith.constant 0 : index
    %c0_40 = arith.constant 0 : index
    %c0_41 = arith.constant 0 : index
    %144 = vector.load %arg11[%c0_38, %c0_39, %c0_40, %c0_41] : memref<1x4x8x32xf32, #tpu.memory_space<vmem>>, vector<1x4x8x32xf32>
    %145 = vector.shape_cast %144 : vector<1x4x8x32xf32> to vector<4x8x32xf32>
    %146 = vector.shape_cast %143 : vector<4x8x32xf32> to vector<1x4x8x32xf32>
    tpu.vector_store %arg11[%c0_38, %c0_39, %c0_40, %c0_41], %146 {strides = array<i32>} : memref<1x4x8x32xf32, #tpu.memory_space<vmem>>, vector<1x4x8x32xf32>,
    return
  }
  func.func @transform_0(%arg0: i32, %arg1: i32) -> (i32, i32, i32, i32) {
    %c4_i32 = arith.constant 4 : i32
    %0 = arith.muli %arg1, %c4_i32 : i32
    %c1_i32 = arith.constant 1 : i32
    %1 = arith.subi %0, %c1_i32 : i32
    %c0_i32 = arith.constant 0 : i32
    %2 = arith.maxsi %1, %c0_i32 : i32
    %c0_i32_0 = arith.constant 0 : i32
    %c0_i32_1 = arith.constant 0 : i32
    %c0_i32_2 = arith.constant 0 : i32
    return %arg0, %2, %c0_i32_0, %c0_i32_1 : i32, i32, i32, i32
  }
  func.func @transform_1(%arg0: i32, %arg1: i32) -> (i32, i32, i32, i32) {
    %c0_i32 = arith.constant 0 : i32
    %c0_i32_0 = arith.constant 0 : i32
    %c0_i32_1 = arith.constant 0 : i32
    return %arg0, %arg1, %c0_i32, %c0_i32_0 : i32, i32, i32, i32
  }
  func.func @transform_2(%arg0: i32, %arg1: i32) -> (i32, i32, i32, i32) {
    %c4_i32 = arith.constant 4 : i32
    %0 = arith.muli %arg1, %c4_i32 : i32
    %c4_i32_0 = arith.constant 4 : i32
    %1 = arith.addi %0, %c4_i32_0 : i32
    %c7_i32 = arith.constant 7 : i32
    %2 = arith.minsi %1, %c7_i32 : i32
    %c0_i32 = arith.constant 0 : i32
    %c0_i32_1 = arith.constant 0 : i32
    %c0_i32_2 = arith.constant 0 : i32
    return %arg0, %2, %c0_i32, %c0_i32_1 : i32, i32, i32, i32
  }
  func.func @transform_3(%arg0: i32, %arg1: i32) -> (i32, i32) {
    %c0_i32 = arith.constant 0 : i32
    %c0_i32_0 = arith.constant 0 : i32
    %c0_i32_1 = arith.constant 0 : i32
    return %c0_i32, %c0_i32_0 : i32, i32
  }
  func.func @transform_4(%arg0: i32, %arg1: i32) -> (i32, i32) {
    %c0_i32 = arith.constant 0 : i32
    %c0_i32_0 = arith.constant 0 : i32
    %c0_i32_1 = arith.constant 0 : i32
    return %c0_i32, %c0_i32_0 : i32, i32
  }
  func.func @transform_5(%arg0: i32, %arg1: i32) -> (i32, i32) {
    %c0_i32 = arith.constant 0 : i32
    %c0_i32_0 = arith.constant 0 : i32
    %c0_i32_1 = arith.constant 0 : i32
    return %c0_i32, %c0_i32_0 : i32, i32
  }
  func.func @transform_6(%arg0: i32, %arg1: i32) -> (i32, i32) {
    %c0_i32 = arith.constant 0 : i32
    %c0_i32_0 = arith.constant 0 : i32
    %c0_i32_1 = arith.constant 0 : i32
    return %c0_i32, %c0_i32_0 : i32, i32
  }
  func.func @transform_7(%arg0: i32, %arg1: i32) -> (i32, i32) {
    %c0_i32 = arith.constant 0 : i32
    %c0_i32_0 = arith.constant 0 : i32
    %c0_i32_1 = arith.constant 0 : i32
    return %c0_i32, %c0_i32_0 : i32, i32
  }
  func.func @transform_8(%arg0: i32, %arg1: i32) -> (i32, i32) {
    %c0_i32 = arith.constant 0 : i32
    %c0_i32_0 = arith.constant 0 : i32
    %c0_i32_1 = arith.constant 0 : i32
    return %c0_i32, %c0_i32_0 : i32, i32
  }
  func.func @transform_9(%arg0: i32, %arg1: i32) -> (i32, i32, i32, i32) {
    %c0_i32 = arith.constant 0 : i32
    %c0_i32_0 = arith.constant 0 : i32
    %c0_i32_1 = arith.constant 0 : i32
    return %arg0, %arg1, %c0_i32, %c0_i32_0 : i32, i32, i32, i32
  }
}

</mosaic_0001>

<llo_original>
// kernel: tpu_custom_call.1
$region0: #{tpu_custom_call.1}
  #allocation0 [shape = 'u32[]', space=smem, size = 0x4, offset = 0x4, fixed_abs, tag = 'smem constant byte address 0x4 - core index']
  #allocation1 [shape = 'u32[144,128]{1,0:T(1,128)}', space=vmem, size = 0x12000, scoped, tag = 'internal scratch']
  %s0 = inlined_call_operand.vmem [shape: f32[2,8,8,32], index: 0, kind: input, shape index: {}]
  %s1 = inlined_call_operand.hbm [shape: f32[2,8,8,32], index: 1, kind: input, shape index: {}]
  %s2 = inlined_call_operand.hbm [shape: f32[2,8,8,32], index: 2, kind: input, shape index: {}]
  %s3 = inlined_call_operand.vmem [shape: f32[32,128], index: 3, kind: input, shape index: {}]
  %s4 = inlined_call_operand.vmem [shape: f32[1,128], index: 4, kind: input, shape index: {}]
  %s5 = inlined_call_operand.hbm [shape: f32[9,128], index: 5, kind: input, shape index: {}]
  %s6 = inlined_call_operand.vmem [shape: f32[1,128], index: 6, kind: input, shape index: {}]
  %s7 = inlined_call_operand.vmem [shape: f32[128,32], index: 7, kind: input, shape index: {}]
  %s8 = inlined_call_operand.vmem [shape: f32[1,32], index: 8, kind: input, shape index: {}]
  %s9 = inlined_call_operand.hbm [shape: f32[2,8,8,32], index: 9, kind: output, shape index: {}]
  %s10 = sld [smem:[#allocation0]]
  $region81: #{tpu_custom_call.1} parent=0
    _
  %s12 = ssub.s32 1, %s10
  %s13 = scalar_select 0, %s12, %s10
  $region1: #{tpu_custom_call.1} parent=0
    #allocation2 [shape = 'u8[32768]{0}', space=vmem, size = 0x8000, scoped, tag = 'input window, operand 1']
    #allocation3 [shape = 's32[2]{0}', space=sflag, size = 0x8, scoped, tag = 'scoped memory for tpu_custom_call.1']
    #allocation4 [shape = 's32[2]{0}', space=sflag, size = 0x8, scoped, tag = 'scoped memory for tpu_custom_call.1']
    #allocation5 [shape = 'u8[8192]{0}', space=vmem, size = 0x2000, scoped, tag = 'input window, operand 2']
    #allocation6 [shape = 's32[2]{0}', space=sflag, size = 0x8, scoped, tag = 'scoped memory for tpu_custom_call.1']
    #allocation7 [shape = 'u8[8192]{0}', space=vmem, size = 0x2000, scoped, tag = 'input window, operand 5, single buffered']
    #allocation8 [shape = 'u8[32768]{0}', space=vmem, size = 0x8000, scoped, tag = 'output window, operand 0']
    %14 = vsyncpa [#allocation3], 0
    %s15 = scalar_lea.sflag [#allocation3], 1
    %16 = vsyncpa %s15, 0
    %17 = vsyncpa [#allocation6], 0
    %s18 = scalar_lea.sflag [#allocation6], 1
    %19 = vsyncpa %s18, 0
    %20 = vsyncpa [#allocation4], 0
    %s21 = scalar_lea.sflag [#allocation4], 1
    %22 = vsyncpa %s21, 0
    loop: start=0, step=1, limit=6
    $region2: #{tpu_custom_call.1} parent=1 // loop_pre_header
      _
    $region3: #{tpu_custom_call.1} parent=1 // loop_header
      %s24 = sphi 0, %s28
      %p25 = scmp.ge.s32.totalorder %s24, 6
      %s31 = sphi 0, %s43
      %s32 = sphi 0, %s39
      %s33 = sphi 0, %s31
      %s34 = sphi 0, %s32
      %s35 = sphi 0, %s33
      %s36 = sphi 0, %s34
      %s56 = sphi 0, %s58
      %s59 = sphi 0, %s56
      %s60 = sphi 0, %s59
      %s76 = sphi 0, %s60
      %s84 = sphi 0, %s86
      %s87 = sphi 0, %s84
      %s88 = sphi 0, %s87
      %s104 = sphi 0, %s88
      %s120 = sphi 0, %s122
      %s123 = sphi 0, %s120
      %s124 = sphi 0, %s123
      %s140 = sphi 0, %s124
      %s144 = sphi 0, %s144
      %s146 = sphi 0, %s144
      %s147 = sphi 0, %s146
      %s161 = sphi 0, %s147
      %s165 = sphi 0, %s165
      %s167 = sphi 0, %s165
      %s168 = sphi 0, %s167
      %s182 = sphi 0, %s168
      %s186 = sphi 0, %s186
      %s188 = sphi 0, %s186
      %s189 = sphi 0, %s188
      %s203 = sphi 0, %s189
      %s207 = sphi 0, %s207
      %s209 = sphi 0, %s207
      %s210 = sphi 0, %s209
      %s224 = sphi 0, %s210
      %s228 = sphi 0, %s228
      %s230 = sphi 0, %s228
      %s231 = sphi 0, %s230
      %s245 = sphi 0, %s231
      %s249 = sphi 0, %s249
      %s251 = sphi 0, %s249
      %s252 = sphi 0, %s251
      %s266 = sphi 0, %s252
      %s274 = sphi 0, %s276
      %s277 = sphi 0, %s274
      %s278 = sphi 0, %s277
      %s294 = sphi 0, %s278
    $region4: #{tpu_custom_call.1} parent=1 // loop_header_branch
      %27 = sbr.rel (%p25) target = $region8
    $region5: #{tpu_custom_call.1} parent=1 // loop_body
      %s29 = ssub.s32 %s24, 1
      %s30 = ssub.s32 %s24, 2
      %s37 = sadd.s32 1, %s32
      %p38 = scmp.ge.s32.totalorder %s37, 2
      %s39 = scalar_select %p38, 0, %s37
      %s40 = sadd.s32 1, %s31
      %s41 = scalar_select %p38, %s40, %s31
      %p42 = scmp.ge.s32.totalorder %s41, 2
      %s43 = scalar_select %p42, 0, %s41
      %s44 = smul.u32 %s32, 4
      %s45 = ssub.s32 %s44, 1
      %p46 = scmp.gt.s32.totalorder %s45, 0
      %s47 = scalar_select %p46, %s45, 0
      %s48 = smul.u32 %s39, 4
      %s49 = ssub.s32 %s48, 1
      %p50 = scmp.gt.s32.totalorder %s49, 0
      %s51 = scalar_select %p50, %s49, 0
      %s52 = ssub.s32 %s31, %s43
      %s53 = ssub.s32 %s47, %s51
      %s54 = sor.u32 %s52, %s53
      %p55 = scmp.eq.s32.totalorder %s54, 0
      %s57 = sadd.s32 %s56, 1
      %s58 = scalar_select %p55, %s56, %s57
      %p61 = pneg %p55
      %p62 = scmp.eq.s32.totalorder %s24, 3
      %p63 = por %p61, %p62
      %p64 = scmp.ne.s32.totalorder %s56, %s59
      %p65 = scmp.eq.s32.totalorder %s24, 0
      %p66 = por %p64, %p65
      %p67 = scmp.ne.s32.totalorder %s56, %s59
      %p68 = scmp.eq.s32.totalorder %s29, 3
      %p69 = por %p67, %p68
      %p70 = scmp.ne.s32.totalorder %s59, %s60
      %p71 = scmp.eq.s32.totalorder %s29, 0
      %p72 = por %p70, %p71
      %p73 = scmp.ne.s32.totalorder %s59, %s60
      %p74 = scmp.eq.s32.totalorder %s30, 3
      %p75 = por %p73, %p74
      %p77 = scmp.ne.s32.totalorder %s60, %s76
      %p78 = scmp.eq.s32.totalorder %s30, 0
      %p79 = por %p77, %p78
      %s80 = ssub.s32 %s31, %s43
      %s81 = ssub.s32 %s32, %s39
      %s82 = sor.u32 %s80, %s81
      %p83 = scmp.eq.s32.totalorder %s82, 0
      %s85 = sadd.s32 %s84, 1
      %s86 = scalar_select %p83, %s84, %s85
      %p89 = pneg %p83
      %p90 = scmp.eq.s32.totalorder %s24, 3
      %p91 = por %p89, %p90
      %p92 = scmp.ne.s32.totalorder %s84, %s87
      %p93 = scmp.eq.s32.totalorder %s24, 0
      %p94 = por %p92, %p93
      %p95 = scmp.ne.s32.totalorder %s84, %s87
      %p96 = scmp.eq.s32.totalorder %s29, 3
      %p97 = por %p95, %p96
      %p98 = scmp.ne.s32.totalorder %s87, %s88
      %p99 = scmp.eq.s32.totalorder %s29, 0
      %p100 = por %p98, %p99
      %p101 = scmp.ne.s32.totalorder %s87, %s88
      %p102 = scmp.eq.s32.totalorder %s30, 3
      %p103 = por %p101, %p102
      %p105 = scmp.ne.s32.totalorder %s88, %s104
      %p106 = scmp.eq.s32.totalorder %s30, 0
      %p107 = por %p105, %p106
      %s108 = smul.u32 %s32, 4
      %s109 = sadd.s32 %s108, 4
      %p110 = scmp.lt.s32.totalorder %s109, 7
      %s111 = scalar_select %p110, %s109, 7
      %s112 = smul.u32 %s39, 4
      %s113 = sadd.s32 %s112, 4
      %p114 = scmp.lt.s32.totalorder %s113, 7
      %s115 = scalar_select %p114, %s113, 7
      %s116 = ssub.s32 %s31, %s43
      %s117 = ssub.s32 %s111, %s115
      %s118 = sor.u32 %s116, %s117
      %p119 = scmp.eq.s32.totalorder %s118, 0
      %s121 = sadd.s32 %s120, 1
      %s122 = scalar_select %p119, %s120, %s121
      %p125 = pneg %p119
      %p126 = scmp.eq.s32.totalorder %s24, 3
      %p127 = por %p125, %p126
      %p128 = scmp.ne.s32.totalorder %s120, %s123
      %p129 = scmp.eq.s32.totalorder %s24, 0
      %p130 = por %p128, %p129
      %p131 = scmp.ne.s32.totalorder %s120, %s123
      %p132 = scmp.eq.s32.totalorder %s29, 3
      %p133 = por %p131, %p132
      %p134 = scmp.ne.s32.totalorder %s123, %s124
      %p135 = scmp.eq.s32.totalorder %s29, 0
      %p136 = por %p134, %p135
      %p137 = scmp.ne.s32.totalorder %s123, %s124
      %p138 = scmp.eq.s32.totalorder %s30, 3
      %p139 = por %p137, %p138
      %p141 = scmp.ne.s32.totalorder %s124, %s140
      %p142 = scmp.eq.s32.totalorder %s30, 0
      %p143 = por %p141, %p142
      %s145 = sadd.s32 %s144, 1
      %p148 = scmp.eq.s32.totalorder %s24, 3
      %p149 = scmp.ne.s32.totalorder %s144, %s146
      %p150 = scmp.eq.s32.totalorder %s24, 0
      %p151 = por %p149, %p150
      %p152 = scmp.ne.s32.totalorder %s144, %s146
      %p153 = scmp.eq.s32.totalorder %s29, 3
      %p154 = por %p152, %p153
      %p155 = scmp.ne.s32.totalorder %s146, %s147
      %p156 = scmp.eq.s32.totalorder %s29, 0
      %p157 = por %p155, %p156
      %p158 = scmp.ne.s32.totalorder %s146, %s147
      %p159 = scmp.eq.s32.totalorder %s30, 3
      %p160 = por %p158, %p159
      %p162 = scmp.ne.s32.totalorder %s147, %s161
      %p163 = scmp.eq.s32.totalorder %s30, 0
      %p164 = por %p162, %p163
      %s166 = sadd.s32 %s165, 1
      %p169 = scmp.eq.s32.totalorder %s24, 3
      %p170 = scmp.ne.s32.totalorder %s165, %s167
      %p171 = scmp.eq.s32.totalorder %s24, 0
      %p172 = por %p170, %p171
      %p173 = scmp.ne.s32.totalorder %s165, %s167
      %p174 = scmp.eq.s32.totalorder %s29, 3
      %p175 = por %p173, %p174
      %p176 = scmp.ne.s32.totalorder %s167, %s168
      %p177 = scmp.eq.s32.totalorder %s29, 0
      %p178 = por %p176, %p177
      %p179 = scmp.ne.s32.totalorder %s167, %s168
      %p180 = scmp.eq.s32.totalorder %s30, 3
      %p181 = por %p179, %p180
      %p183 = scmp.ne.s32.totalorder %s168, %s182
      %p184 = scmp.eq.s32.totalorder %s30, 0
      %p185 = por %p183, %p184
      %s187 = sadd.s32 %s186, 1
      %p190 = scmp.eq.s32.totalorder %s24, 3
      %p191 = scmp.ne.s32.totalorder %s186, %s188
      %p192 = scmp.eq.s32.totalorder %s24, 0
      %p193 = por %p191, %p192
      %p194 = scmp.ne.s32.totalorder %s186, %s188
      %p195 = scmp.eq.s32.totalorder %s29, 3
      %p196 = por %p194, %p195
      %p197 = scmp.ne.s32.totalorder %s188, %s189
      %p198 = scmp.eq.s32.totalorder %s29, 0
      %p199 = por %p197, %p198
      %p200 = scmp.ne.s32.totalorder %s188, %s189
      %p201 = scmp.eq.s32.totalorder %s30, 3
      %p202 = por %p200, %p201
      %p204 = scmp.ne.s32.totalorder %s189, %s203
      %p205 = scmp.eq.s32.totalorder %s30, 0
      %p206 = por %p204, %p205
      %s208 = sadd.s32 %s207, 1
      %p211 = scmp.eq.s32.totalorder %s24, 3
      %p212 = scmp.ne.s32.totalorder %s207, %s209
      %p213 = scmp.eq.s32.totalorder %s24, 0
      %p214 = por %p212, %p213
      %p215 = scmp.ne.s32.totalorder %s207, %s209
      %p216 = scmp.eq.s32.totalorder %s29, 3
      %p217 = por %p215, %p216
      %p218 = scmp.ne.s32.totalorder %s209, %s210
      %p219 = scmp.eq.s32.totalorder %s29, 0
      %p220 = por %p218, %p219
      %p221 = scmp.ne.s32.totalorder %s209, %s210
      %p222 = scmp.eq.s32.totalorder %s30, 3
      %p223 = por %p221, %p222
      %p225 = scmp.ne.s32.totalorder %s210, %s224
      %p226 = scmp.eq.s32.totalorder %s30, 0
      %p227 = por %p225, %p226
      %s229 = sadd.s32 %s228, 1
      %p232 = scmp.eq.s32.totalorder %s24, 3
      %p233 = scmp.ne.s32.totalorder %s228, %s230
      %p234 = scmp.eq.s32.totalorder %s24, 0
      %p235 = por %p233, %p234
      %p236 = scmp.ne.s32.totalorder %s228, %s230
      %p237 = scmp.eq.s32.totalorder %s29, 3
      %p238 = por %p236, %p237
      %p239 = scmp.ne.s32.totalorder %s230, %s231
      %p240 = scmp.eq.s32.totalorder %s29, 0
      %p241 = por %p239, %p240
      %p242 = scmp.ne.s32.totalorder %s230, %s231
      %p243 = scmp.eq.s32.totalorder %s30, 3
      %p244 = por %p242, %p243
      %p246 = scmp.ne.s32.totalorder %s231, %s245
      %p247 = scmp.eq.s32.totalorder %s30, 0
      %p248 = por %p246, %p247
      %s250 = sadd.s32 %s249, 1
      %p253 = scmp.eq.s32.totalorder %s24, 3
      %p254 = scmp.ne.s32.totalorder %s249, %s251
      %p255 = scmp.eq.s32.totalorder %s24, 0
      %p256 = por %p254, %p255
      %p257 = scmp.ne.s32.totalorder %s249, %s251
      %p258 = scmp.eq.s32.totalorder %s29, 3
      %p259 = por %p257, %p258
      %p260 = scmp.ne.s32.totalorder %s251, %s252
      %p261 = scmp.eq.s32.totalorder %s29, 0
      %p262 = por %p260, %p261
      %p263 = scmp.ne.s32.totalorder %s251, %s252
      %p264 = scmp.eq.s32.totalorder %s30, 3
      %p265 = por %p263, %p264
      %p267 = scmp.ne.s32.totalorder %s252, %s266
      %p268 = scmp.eq.s32.totalorder %s30, 0
      %p269 = por %p267, %p268
      %s270 = ssub.s32 %s31, %s43
      %s271 = ssub.s32 %s32, %s39
      %s272 = sor.u32 %s270, %s271
      %p273 = scmp.eq.s32.totalorder %s272, 0
      %s275 = sadd.s32 %s274, 1
      %s276 = scalar_select %p273, %s274, %s275
      %p279 = pneg %p273
      %p280 = scmp.eq.s32.totalorder %s24, 3
      %p281 = por %p279, %p280
      %p282 = scmp.ne.s32.totalorder %s274, %s277
      %p283 = scmp.eq.s32.totalorder %s24, 0
      %p284 = por %p282, %p283
      %p285 = scmp.ne.s32.totalorder %s274, %s277
      %p286 = scmp.eq.s32.totalorder %s29, 3
      %p287 = por %p285, %p286
      %p288 = scmp.ne.s32.totalorder %s277, %s278
      %p289 = scmp.eq.s32.totalorder %s29, 0
      %p290 = por %p288, %p289
      %p291 = scmp.ne.s32.totalorder %s277, %s278
      %p292 = scmp.eq.s32.totalorder %s30, 3
      %p293 = por %p291, %p292
      %p295 = scmp.ne.s32.totalorder %s278, %s294
      %p296 = scmp.eq.s32.totalorder %s30, 0
      %p297 = por %p295, %p296
      %p298 = scmp.le.s32.totalorder 1, %s24
      %p299 = scmp.lt.s32.totalorder %s24, 5
      %p300 = pnand %p298, %p299
      %p301 = pneg %p300
      // Predicated region
      $region9: #{tpu_custom_call.1} parent=5 // pred_check
        _
      $region10: #{tpu_custom_call.1} parent=5 // pred_check_branch
        %303 = sbr.rel (%p300) target = $region12
      $region11: #{tpu_custom_call.1} parent=5 // pred_region
        %s304 = ssub.s32 %s24, 1
        // Predicated region
        $region13: #{tpu_custom_call.1} parent=11 // pred_check
          %p305 = pneg %p157
        $region14: #{tpu_custom_call.1} parent=11 // pred_check_branch
          %307 = sbr.rel (%p305) target = $region16
        $region15: #{tpu_custom_call.1} parent=11 // pred_region
          _
        $region16: #{tpu_custom_call.1} parent=11 // pred_fallthru
          _
        // Predicated region
        $region17: #{tpu_custom_call.1} parent=11 // pred_check
          %p308 = pneg %p178
        $region18: #{tpu_custom_call.1} parent=11 // pred_check_branch
          %310 = sbr.rel (%p308) target = $region20
        $region19: #{tpu_custom_call.1} parent=11 // pred_region
          _
        $region20: #{tpu_custom_call.1} parent=11 // pred_fallthru
          _
        // Predicated region
        $region21: #{tpu_custom_call.1} parent=11 // pred_check
          %p311 = pneg %p199
        $region22: #{tpu_custom_call.1} parent=11 // pred_check_branch
          %313 = sbr.rel (%p311) target = $region24
        $region23: #{tpu_custom_call.1} parent=11 // pred_region
          %s315 = ssub.s32 256, 256
          %316 = vsyncadd [#allocation6], %s315
          %s317 = sshll.u32 [#allocation7], 4
          %s318 = int_to_ptr.vmem [resolvable:$true] %s317
          %323 = dma.hbm_to_vmem [thread:$0]  %s5, 256, %s318, [#allocation6], 128, 128, 8
        $region24: #{tpu_custom_call.1} parent=11 // pred_fallthru
          _
        // Predicated region
        $region25: #{tpu_custom_call.1} parent=11 // pred_check
          %p324 = pneg %p220
        $region26: #{tpu_custom_call.1} parent=11 // pred_check_branch
          %326 = sbr.rel (%p324) target = $region28
        $region27: #{tpu_custom_call.1} parent=11 // pred_region
          _
        $region28: #{tpu_custom_call.1} parent=11 // pred_fallthru
          _
        // Predicated region
        $region29: #{tpu_custom_call.1} parent=11 // pred_check
          %p327 = pneg %p241
        $region30: #{tpu_custom_call.1} parent=11 // pred_check_branch
          %329 = sbr.rel (%p327) target = $region32
        $region31: #{tpu_custom_call.1} parent=11 // pred_region
          _
        $region32: #{tpu_custom_call.1} parent=11 // pred_fallthru
          _
        // Predicated region
        $region33: #{tpu_custom_call.1} parent=11 // pred_check
          %p330 = pneg %p262
        $region34: #{tpu_custom_call.1} parent=11 // pred_check_branch
          %332 = sbr.rel (%p330) target = $region36
        $region35: #{tpu_custom_call.1} parent=11 // pred_region
          _
        $region36: #{tpu_custom_call.1} parent=11 // pred_fallthru
          _
      $region12: #{tpu_custom_call.1} parent=5 // pred_fallthru
        _
      %p333 = scmp.lt.s32.totalorder %s24, 4
      // Predicated region
      $region37: #{tpu_custom_call.1} parent=5 // pred_check
        %p334 = pneg %p333
      $region38: #{tpu_custom_call.1} parent=5 // pred_check_branch
        %336 = sbr.rel (%p334) target = $region40
      $region39: #{tpu_custom_call.1} parent=5 // pred_region
        // Predicated region
        $region41: #{tpu_custom_call.1} parent=39 // pred_check
          %p337 = pneg %p66
        $region42: #{tpu_custom_call.1} parent=39 // pred_check_branch
          %339 = sbr.rel (%p337) target = $region44
        $region43: #{tpu_custom_call.1} parent=39 // pred_region
          %s340 = smul.u32 %s32, 4
          %s341 = ssub.s32 %s340, 1
          %p342 = scmp.gt.s32.totalorder %s341, 0
          %s343 = scalar_select %p342, %s341, 0
          %p344 = scmp.lt.s32.totalorder %s31, 1
          %s345 = scalar_select %p344, %s31, 1
          %p346 = scmp.lt.s32.totalorder %s343, 7
          %s347 = scalar_select %p346, %s343, 7
          %s348 = smul.addr %s345, 8
          %s349 = sadd.s32 %s347, %s348
          %s350 = smul.addr %s349, 8
          %s351 = scalar_lea.vmem %s0, %s350
          %s352 = smul.u32 %s32, 4
          %s353 = ssub.s32 %s352, 1
          %p354 = scmp.gt.s32.totalorder %s353, 0
          %s355 = scalar_select %p354, %s353, 0
        $region44: #{tpu_custom_call.1} parent=39 // pred_fallthru
          _
        // Predicated region
        $region45: #{tpu_custom_call.1} parent=39 // pred_check
          %p356 = pneg %p94
        $region46: #{tpu_custom_call.1} parent=39 // pred_check_branch
          %358 = sbr.rel (%p356) target = $region48
        $region47: #{tpu_custom_call.1} parent=39 // pred_region
          %s359 = sand.u32 %s84, 1
          %s360 = scalar_lea.sflag [#allocation3], %s359
          %s361 = sand.u32 %s84, 1
          %s362 = smul.addr %s361, 32
          %s363 = scalar_lea.vmem [#allocation2], %s362
          %s364 = smul.u32 4, %s32
          %s366 = ssub.s32 512, 512
          %367 = vsyncadd %s360, %s366
          %s368 = smul.addr %s31, 8
          %s369 = sadd.s32 %s364, %s368
          %s370 = smul.addr %s369, 128
          %s371 = scalar_lea.hbm %s1, %s370
          %s372 = sshll.u32 %s363, 4
          %s373 = int_to_ptr.vmem [resolvable:$true] %s372
          %378 = dma.hbm_to_vmem [thread:$0]  %s371, 512, %s373, %s360, 128, 128, 8
        $region48: #{tpu_custom_call.1} parent=39 // pred_fallthru
          _
        // Predicated region
        $region49: #{tpu_custom_call.1} parent=39 // pred_check
          %p379 = pneg %p130
        $region50: #{tpu_custom_call.1} parent=39 // pred_check_branch
          %381 = sbr.rel (%p379) target = $region52
        $region51: #{tpu_custom_call.1} parent=39 // pred_region
          %s382 = sand.u32 %s24, 1
          %s383 = scalar_lea.sflag [#allocation6], %s382
          %s384 = sand.u32 %s120, 1
          %s385 = smul.addr %s384, 8
          %s386 = scalar_lea.vmem [#allocation5], %s385
          %s387 = smul.u32 %s32, 4
          %s388 = sadd.s32 %s387, 4
          %p389 = scmp.lt.s32.totalorder %s388, 7
          %s390 = scalar_select %p389, %s388, 7
          %s392 = ssub.s32 128, 128
          %393 = vsyncadd %s383, %s392
          %s394 = smul.addr %s31, 8
          %s395 = sadd.s32 %s390, %s394
          %s396 = smul.addr %s395, 128
          %s397 = scalar_lea.hbm %s2, %s396
          %s399 = sshll.u32 %s386, 4
          %s400 = int_to_ptr.vmem [resolvable:$true] %s399
          %402 = dma.hbm_to_vmem [thread:$0]  %s397, 128, %s400, %s383
        $region52: #{tpu_custom_call.1} parent=39 // pred_fallthru
          _
      $region40: #{tpu_custom_call.1} parent=5 // pred_fallthru
        _
      %p403 = scmp.le.s32.totalorder 1, %s24
      %p404 = scmp.lt.s32.totalorder %s24, 5
      %p405 = pnand %p403, %p404
      %p406 = pneg %p405
      // Predicated region
      $region53: #{tpu_custom_call.1} parent=5 // pred_check
        _
      $region54: #{tpu_custom_call.1} parent=5 // pred_check_branch
        %408 = sbr.rel (%p405) target = $region56
      $region55: #{tpu_custom_call.1} parent=5 // pred_region
        %s409 = ssub.s32 %s24, 1
        %s410 = sand.u32 %s87, 1
        %s411 = scalar_lea.sflag [#allocation3], %s410
        %s412 = sand.u32 %s87, 1
        %s413 = smul.addr %s412, 32
        %s414 = scalar_lea.vmem [#allocation2], %s413
        // Predicated region
        $region57: #{tpu_custom_call.1} parent=55 // pred_check
          %p415 = pneg %p100
        $region58: #{tpu_custom_call.1} parent=55 // pred_check_branch
          %417 = sbr.rel (%p415) target = $region60
        $region59: #{tpu_custom_call.1} parent=55 // pred_region
          %418 = dma.done %s411, 512
        $region60: #{tpu_custom_call.1} parent=55 // pred_fallthru
          _
        %s419 = sand.u32 %s29, 1
        %s420 = scalar_lea.sflag [#allocation6], %s419
        %s421 = sand.u32 %s123, 1
        %s422 = smul.addr %s421, 8
        %s423 = scalar_lea.vmem [#allocation5], %s422
        // Predicated region
        $region61: #{tpu_custom_call.1} parent=55 // pred_check
          %p424 = pneg %p136
        $region62: #{tpu_custom_call.1} parent=55 // pred_check_branch
          %426 = sbr.rel (%p424) target = $region64
        $region63: #{tpu_custom_call.1} parent=55 // pred_region
          %427 = dma.done %s420, 128
        $region64: #{tpu_custom_call.1} parent=55 // pred_fallthru
          _
        // Predicated region
        $region65: #{tpu_custom_call.1} parent=55 // pred_check
          %p428 = pneg %p199
        $region66: #{tpu_custom_call.1} parent=55 // pred_check_branch
          %430 = sbr.rel (%p428) target = $region68
        $region67: #{tpu_custom_call.1} parent=55 // pred_region
          %431 = dma.done [#allocation6], 256
        $region68: #{tpu_custom_call.1} parent=55 // pred_fallthru
          _
        %s432 = smul.u32 %s34, 4
        %s433 = ssub.s32 %s432, 1
        %p434 = scmp.gt.s32.totalorder %s433, 0
        %s435 = scalar_select %p434, %s433, 0
        %p436 = scmp.lt.s32.totalorder %s33, 1
        %s437 = scalar_select %p436, %s33, 1
        %p438 = scmp.lt.s32.totalorder %s435, 7
        %s439 = scalar_select %p438, %s435, 7
        %s440 = smul.addr %s437, 8
        %s441 = sadd.s32 %s439, %s440
        %s442 = smul.addr %s441, 8
        %s443 = scalar_lea.vmem %s0, %s442
        %p444 = pneg %p72
        %p445 = pneg %p69
        %s446 = sand.u32 %s87, 1
        %s447 = scalar_lea.sflag [#allocation3], %s446
        %s448 = sand.u32 %s87, 1
        %s449 = smul.addr %s448, 32
        %s450 = scalar_lea.vmem [#allocation2], %s449
        %p451 = pneg %p100
        %p452 = pneg %p97
        %s453 = sand.u32 %s29, 1
        %s454 = scalar_lea.sflag [#allocation6], %s453
        %s455 = sand.u32 %s123, 1
        %s456 = smul.addr %s455, 8
        %s457 = scalar_lea.vmem [#allocation5], %s456
        %p458 = pneg %p136
        %p459 = pneg %p133
        %p460 = pneg %p157
        %p461 = pneg %p154
        %p462 = pneg %p178
        %p463 = pneg %p175
        %p464 = pneg %p199
        %p465 = pneg %p196
        %p466 = pneg %p220
        %p467 = pneg %p217
        %p468 = pneg %p241
        %p469 = pneg %p238
        %p470 = pneg %p262
        %p471 = pneg %p259
        %p472 = pneg %p290
        %p473 = pneg %p287
        %s474 = sand.u32 %s277, 1
        %s475 = scalar_lea.sflag [#allocation4], %s474
        %s476 = sand.u32 %s277, 1
        %s477 = smul.addr %s476, 32
        %s478 = scalar_lea.vmem [#allocation8], %s477
        %s479 = smul.u32 %s34, 4
        %s480 = ssub.s32 %s479, 1
        %p481 = scmp.gt.s32.totalorder %s480, 0
        %s482 = scalar_select %p481, %s480, 0
        %p483 = scmp.lt.s32.totalorder %s33, 1
        %s484 = scalar_select %p483, %s33, 1
        %p485 = scmp.lt.s32.totalorder %s482, 7
        %s486 = scalar_select %p485, %s482, 7
        %s487 = smul.addr %s484, 8
        %s488 = sadd.s32 %s486, %s487
        %s489 = smul.addr %s488, 8
        %s490 = scalar_lea.vmem %s0, %s489
        %s491 = smul.u32 %s34, 4
        %s492 = ssub.s32 %s491, 1
        %p493 = scmp.gt.s32.totalorder %s492, 0
        %s494 = scalar_select %p493, %s492, 0
        %s495 = smul.u32 4, %s34
        %s496 = smul.u32 %s34, 4
        %s497 = sadd.s32 %s496, 4
        %p498 = scmp.lt.s32.totalorder %s497, 7
        %s499 = scalar_select %p498, %s497, 7
        %s500 = smul.u32 4, %s34
        %v501 = vld [vmem:[%s490] sm:$0xff]
        %v502 = vld [vmem:[%s414] sm:$0xff]
        %v503 = vld [vmem:[%s414 + $0x8] sm:$0xff]
        %v504 = vld [vmem:[%s414 + $0x10] sm:$0xff]
        %v505 = vld [vmem:[%s414 + $0x18] sm:$0xff]
        %v506 = vld [vmem:[%s423] sm:$0xff]
        %v507 = vld [vmem:[%s3] sm:$0xff]
        %v508 = vld [vmem:[%s3 + $0x8] sm:$0xff]
        %v509 = vld [vmem:[%s3 + $0x10] sm:$0xff]
        %v510 = vld [vmem:[%s3 + $0x18] sm:$0xff]
        %v511 = vld [vmem:[%s4] sm:$0x1]
        %v513 = vlaneseq
        %v514 = vshrl.u32 %v513, 7
        %v515 = vsub.s32 0, %v514
        %v516 = vrot.slane %v511, %v515
        %vm518 = vcmask 261120
        %v520 = vsel %vm518, %v501, 0
        %v523 = vsel %vm518, %v502, 0
        %v526 = vsel %vm518, %v503, 0
        %v529 = vsel %vm518, %v504, 0
        %v532 = vsel %vm518, %v505, 0
        %v535 = vsel %vm518, %v506, 0
        %537 = vmatprep.subr.mxu0 0.0
        %538 = vmatpush1.msra.mxu0 0.0
        %539 = vmatprep.subr.mxu0 0.0
        %540 = vmatpush1.msra.mxu0 0.0
        %541 = vmatprep.subr.mxu0 0.0
        %542 = vmatpush1.msra.mxu0 0.0
        %543 = vmatprep.subr.mxu0 0.0
        %544 = vmatpush1.msra.mxu0 0.0
        %545 = vmatprep.subr.mxu0 0.0
        %546 = vmatpush1.msra.mxu0 0.0
        %547 = vmatprep.subr.mxu0 0.0
        %548 = vmatpush1.msra.mxu0 0.0
        %549 = vmatprep.subr.mxu0 0.0
        %550 = vmatpush1.msra.mxu0 0.0
        %551 = vmatprep.subr.mxu0 0.0
        %552 = vmatpush1.msra.mxu0 0.0
        %553 = vmatprep.subr.mxu0 0.0
        %554 = vmatpush1.msra.mxu0 0.0
        %555 = vmatprep.subr.mxu0 0.0
        %556 = vmatpush1.msra.mxu0 0.0
        %557 = vmatprep.subr.mxu0 0.0
        %558 = vmatpush1.msra.mxu0 0.0
        %559 = vmatprep.subr.mxu0 0.0
        %560 = vmatpush1.msra.mxu0 0.0
        %561 = vmatprep.subr.mxu0 0.0
        %562 = vmatpush1.msra.mxu0 %v510
        %563 = vmatprep.subr.mxu0 0.0
        %564 = vmatpush1.msra.mxu0 %v509
        %565 = vmatprep.subr.mxu0 0.0
        %566 = vmatpush1.msra.mxu0 %v508
        %567 = vmatprep.subr.mxu0 0.0
        %568 = vmatpush1.msra.mxu0 %v507
        %569 = vmatprep.subr.mxu0 0.0
        %570 = vmatpush2.msra.mxu0 0.0
        %571 = vmatprep.subr.mxu0 0.0
        %572 = vmatpush2.msra.mxu0 0.0
        %573 = vmatprep.subr.mxu0 0.0
        %574 = vmatpush2.msra.mxu0 0.0
        %575 = vmatprep.subr.mxu0 0.0
        %576 = vmatpush2.msra.mxu0 0.0
        %577 = vmatprep.subr.mxu0 0.0
        %578 = vmatpush2.msra.mxu0 0.0
        %579 = vmatprep.subr.mxu0 0.0
        %580 = vmatpush2.msra.mxu0 0.0
        %581 = vmatprep.subr.mxu0 0.0
        %582 = vmatpush2.msra.mxu0 0.0
        %583 = vmatprep.subr.mxu0 0.0
        %584 = vmatpush2.msra.mxu0 0.0
        %585 = vmatprep.subr.mxu0 0.0
        %586 = vmatpush2.msra.mxu0 0.0
        %587 = vmatprep.subr.mxu0 0.0
        %588 = vmatpush2.msra.mxu0 0.0
        %589 = vmatprep.subr.mxu0 0.0
        %590 = vmatpush2.msra.mxu0 0.0
        %591 = vmatprep.subr.mxu0 0.0
        %592 = vmatpush2.msra.mxu0 0.0
        %593 = vmatprep.subr.mxu0 0.0
        %594 = vmatpush2.msra.mxu0 0.0
        %595 = vmatprep.subr.mxu0 0.0
        %596 = vmatpush2.msra.mxu0 0.0
        %597 = vmatprep.subr.mxu0 0.0
        %598 = vmatpush2.msra.mxu0 0.0
        %599 = vmatprep.subr.mxu0 0.0
        %600 = vmatpush2.msra.mxu0 0.0
        %601 = vmatprep.mubr.f32.mxu0 0.0
        %602 = vmatmul.mubr.f32.gmra.mxu0 %v520
        %v603 = vpop.f32.mrf.mxu0
        %v604 = vadd.f32 %v516, %v603
        %v605 = vpop.f32.mrf.mxu0
        %606 = vmatprep.mubr.f32.mxu0 0.0
        %607 = vmatmul.mubr.f32.gmra.mxu0 %v523
        %v608 = vpop.f32.mrf.mxu0
        %v609 = vadd.f32 %v516, %v608
        %v610 = vpop.f32.mrf.mxu0
        %611 = vmatprep.mubr.f32.mxu0 0.0
        %612 = vmatmul.mubr.f32.gmra.mxu0 %v526
        %v613 = vpop.f32.mrf.mxu0
        %v614 = vadd.f32 %v516, %v613
        %v615 = vpop.f32.mrf.mxu0
        %616 = vmatprep.mubr.f32.mxu0 0.0
        %617 = vmatmul.mubr.f32.gmra.mxu0 %v529
        %v618 = vpop.f32.mrf.mxu0
        %v619 = vadd.f32 %v516, %v618
        %v620 = vpop.f32.mrf.mxu0
        %621 = vmatprep.mubr.f32.mxu0 0.0
        %622 = vmatmul.mubr.f32.gmra.mxu0 %v532
        %v623 = vpop.f32.mrf.mxu0
        %v624 = vadd.f32 %v516, %v623
        %v625 = vpop.f32.mrf.mxu0
        %626 = vmatprep.mubr.f32.mxu0 0.0
        %627 = vmatmul.mubr.f32.gmra.mxu0 %v535
        %v628 = vpop.f32.mrf.mxu0
        %v629 = vadd.f32 %v516, %v628
        %v630 = vpop.f32.mrf.mxu0
        %631 = vdwg.mxu0
        %v632 = vlaneseq
        %v633 = vshrl.u32 %v632, 7
        %v634 = vadd.s32 %v633, 8
        %v635 = vadd.s32 %v633, 16
        %v636 = vadd.s32 %v633, 24
        %v637 = vadd.s32 %v633, 32
        %v638 = vadd.s32 %v633, 40
        %vm639 = vcmp.ge.s32.totalorder %v633, 8
        %vm640 = vcmp.ge.s32.totalorder %v634, 8
        %vm641 = vcmp.ge.s32.totalorder %v635, 8
        %vm642 = vcmp.ge.s32.totalorder %v636, 8
        %vm643 = vcmp.ge.s32.totalorder %v637, 8
        %vm644 = vcmp.ge.s32.totalorder %v638, 8
        %p645 = scmp.gt.s32.totalorder %s34, 0
        %s646 = scalar_select %p645, 1, 0
        %v647 = vstv %s646
        %vm648 = vcmp.eq.s32.totalorder %v647, 1
        %vm649 = vmor %vm639, %vm648
        %vm650 = vmor %vm640, %vm648
        %vm651 = vmor %vm641, %vm648
        %vm652 = vmor %vm642, %vm648
        %vm653 = vmor %vm643, %vm648
        %vm654 = vmor %vm644, %vm648
        %vm655 = vcmp.lt.s32.totalorder %v633, 40
        %vm656 = vcmp.lt.s32.totalorder %v634, 40
        %vm657 = vcmp.lt.s32.totalorder %v635, 40
        %vm658 = vcmp.lt.s32.totalorder %v636, 40
        %vm659 = vcmp.lt.s32.totalorder %v637, 40
        %vm660 = vcmp.lt.s32.totalorder %v638, 40
        %p661 = scmp.lt.s32.totalorder %s34, 1
        %s662 = scalar_select %p661, 1, 0
        %v663 = vstv %s662
        %vm664 = vcmp.eq.s32.totalorder %v663, 1
        %vm665 = vmor %vm655, %vm664
        %vm666 = vmor %vm656, %vm664
        %vm667 = vmor %vm657, %vm664
        %vm668 = vmor %vm658, %vm664
        %vm669 = vmor %vm659, %vm664
        %vm670 = vmor %vm660, %vm664
        %vm671 = vmand %vm649, %vm665
        %vm672 = vmand %vm650, %vm666
        %vm673 = vmand %vm651, %vm667
        %vm674 = vmand %vm652, %vm668
        %vm675 = vmand %vm653, %vm669
        %vm676 = vmand %vm654, %vm670
        %v677 = vsel %vm671, 1, 0
        %v678 = vsel %vm672, 1, 0
        %v679 = vsel %vm673, 1, 0
        %v680 = vsel %vm674, 1, 0
        %v681 = vsel %vm675, 1, 0
        %v682 = vsel %vm676, 1, 0
        %vm683 = vcmp.eq.s32.totalorder %v677, 1
        %vm684 = vcmp.eq.s32.totalorder %v678, 1
        %vm685 = vcmp.eq.s32.totalorder %v679, 1
        %vm686 = vcmp.eq.s32.totalorder %v680, 1
        %vm687 = vcmp.eq.s32.totalorder %v681, 1
        %vm688 = vcmp.eq.s32.totalorder %v682, 1
        %v689 = vsel %vm683, %v604, 0.0
        %v690 = vsel %vm684, %v609, 0.0
        %v691 = vsel %vm685, %v614, 0.0
        %v692 = vsel %vm686, %v619, 0.0
        %v693 = vsel %vm687, %v624, 0.0
        %v694 = vsel %vm688, %v629, 0.0
        %vm695 = vcmp.lt.s32.totalorder %v633, 0
        %v696 = vsub.s32 0, %v633
        %v697 = vsel %vm695, %v696, %v633
        %v698 = vshrl.u32 %v697, 3
        %v699 = vand.u32 %v697, 7
        %v700 = vsub.s32 0, %v699
        %v701 = vsel %vm695, %v700, %v699
        %vm702 = vcmp.lt.s32.totalorder %v634, 0
        %v703 = vsub.s32 0, %v634
        %v704 = vsel %vm702, %v703, %v634
        %v705 = vshrl.u32 %v704, 3
        %v706 = vand.u32 %v704, 7
        %v707 = vsub.s32 0, %v706
        %v708 = vsel %vm702, %v707, %v706
        %vm709 = vcmp.lt.s32.totalorder %v635, 0
        %v710 = vsub.s32 0, %v635
        %v711 = vsel %vm709, %v710, %v635
        %v712 = vshrl.u32 %v711, 3
        %v713 = vand.u32 %v711, 7
        %v714 = vsub.s32 0, %v713
        %v715 = vsel %vm709, %v714, %v713
        %vm716 = vcmp.lt.s32.totalorder %v636, 0
        %v717 = vsub.s32 0, %v636
        %v718 = vsel %vm716, %v717, %v636
        %v719 = vshrl.u32 %v718, 3
        %v720 = vand.u32 %v718, 7
        %v721 = vsub.s32 0, %v720
        %v722 = vsel %vm716, %v721, %v720
        %vm723 = vcmp.lt.s32.totalorder %v637, 0
        %v724 = vsub.s32 0, %v637
        %v725 = vsel %vm723, %v724, %v637
        %v726 = vshrl.u32 %v725, 3
        %v727 = vand.u32 %v725, 7
        %v728 = vsub.s32 0, %v727
        %v729 = vsel %vm723, %v728, %v727
        %vm730 = vcmp.lt.s32.totalorder %v638, 0
        %v731 = vsub.s32 0, %v638
        %v732 = vsel %vm730, %v731, %v638
        %v733 = vshrl.u32 %v732, 3
        %v734 = vand.u32 %v732, 7
        %v735 = vsub.s32 0, %v734
        %v736 = vsel %vm730, %v735, %v734
        %vm737 = vcmp.ne.s32.totalorder %v701, 0
        %vm738 = vcmp.ne.s32.totalorder %v708, 0
        %vm739 = vcmp.ne.s32.totalorder %v715, 0
        %vm740 = vcmp.ne.s32.totalorder %v722, 0
        %vm741 = vcmp.ne.s32.totalorder %v729, 0
        %vm742 = vcmp.ne.s32.totalorder %v736, 0
        %vm743 = vcmp.lt.s32.totalorder %v701, 0
        %vm744 = vcmp.lt.s32.totalorder %v708, 0
        %vm745 = vcmp.lt.s32.totalorder %v715, 0
        %vm746 = vcmp.lt.s32.totalorder %v722, 0
        %vm747 = vcmp.lt.s32.totalorder %v729, 0
        %vm748 = vcmp.lt.s32.totalorder %v736, 0
        %vm749 = vmand %vm743, %vm737
        %vm750 = vmand %vm744, %vm738
        %vm751 = vmand %vm745, %vm739
        %vm752 = vmand %vm746, %vm740
        %vm753 = vmand %vm747, %vm741
        %vm754 = vmand %vm748, %vm742
        %v755 = vadd.s32 %v701, 8
        %v756 = vadd.s32 %v708, 8
        %v757 = vadd.s32 %v715, 8
        %v758 = vadd.s32 %v722, 8
        %v759 = vadd.s32 %v729, 8
        %v760 = vadd.s32 %v736, 8
        %v761 = vsel %vm749, %v755, %v701
        %v762 = vsel %vm750, %v756, %v708
        %v763 = vsel %vm751, %v757, %v715
        %v764 = vsel %vm752, %v758, %v722
        %v765 = vsel %vm753, %v759, %v729
        %v766 = vsel %vm754, %v760, %v736
        %vm767 = vcmp.eq.s32.totalorder %v761, 0
        %vm768 = vcmp.eq.s32.totalorder %v762, 0
        %vm769 = vcmp.eq.s32.totalorder %v763, 0
        %vm770 = vcmp.eq.s32.totalorder %v764, 0
        %vm771 = vcmp.eq.s32.totalorder %v765, 0
        %vm772 = vcmp.eq.s32.totalorder %v766, 0
        %v773 = vrot.slane %v689, 7
        %v774 = vrot.slane %v690, 7
        %v775 = vrot.slane %v691, 7
        %v776 = vrot.slane %v692, 7
        %v777 = vrot.slane %v693, 7
        %v778 = vrot.slane %v694, 7
        %vm779 = vcmp.lt.s32.totalorder %v633, 1
        %v780 = vsel %vm779, %v777, %v778
        %v781 = vsel %vm779, %v776, %v777
        %v782 = vsel %vm779, %v775, %v776
        %v783 = vsel %vm779, %v774, %v775
        %v784 = vsel %vm779, %v773, %v774
        %v785 = vsel %vm779, %v778, %v773
        %v786 = vsel %vm767, 1, 0
        %v787 = vsel %vm768, 1, 0
        %v788 = vsel %vm769, 1, 0
        %v789 = vsel %vm770, 1, 0
        %v790 = vsel %vm771, 1, 0
        %v791 = vsel %vm772, 1, 0
        %vm792 = vcmp.eq.s32.totalorder %v786, 1
        %vm793 = vcmp.eq.s32.totalorder %v787, 1
        %vm794 = vcmp.eq.s32.totalorder %v788, 1
        %vm795 = vcmp.eq.s32.totalorder %v789, 1
        %vm796 = vcmp.eq.s32.totalorder %v790, 1
        %vm797 = vcmp.eq.s32.totalorder %v791, 1
        %v798 = vsel %vm792, 0.0, %v785
        %v799 = vsel %vm793, 0.0, %v784
        %v800 = vsel %vm794, 0.0, %v783
        %v801 = vsel %vm795, 0.0, %v782
        %v802 = vsel %vm796, 0.0, %v781
        %v803 = vsel %vm797, 0.0, %v780
        %vm804 = vcmp.eq.s32.totalorder %v761, 7
        %vm805 = vcmp.eq.s32.totalorder %v762, 7
        %vm806 = vcmp.eq.s32.totalorder %v763, 7
        %vm807 = vcmp.eq.s32.totalorder %v764, 7
        %vm808 = vcmp.eq.s32.totalorder %v765, 7
        %vm809 = vcmp.eq.s32.totalorder %v766, 7
        %v810 = vrot.slane %v689, 1
        %v811 = vrot.slane %v690, 1
        %v812 = vrot.slane %v691, 1
        %v813 = vrot.slane %v692, 1
        %v814 = vrot.slane %v693, 1
        %v815 = vrot.slane %v694, 1
        %vm816 = vcmp.lt.s32.totalorder %v633, 7
        %v817 = vsel %vm816, %v814, %v815
        %v818 = vsel %vm816, %v813, %v814
        %v819 = vsel %vm816, %v812, %v813
        %v820 = vsel %vm816, %v811, %v812
        %v821 = vsel %vm816, %v810, %v811
        %v822 = vsel %vm816, %v815, %v810
        %v823 = vsel %vm804, 1, 0
        %v824 = vsel %vm805, 1, 0
        %v825 = vsel %vm806, 1, 0
        %v826 = vsel %vm807, 1, 0
        %v827 = vsel %vm808, 1, 0
        %v828 = vsel %vm809, 1, 0
        %vm829 = vcmp.eq.s32.totalorder %v823, 1
        %vm830 = vcmp.eq.s32.totalorder %v824, 1
        %vm831 = vcmp.eq.s32.totalorder %v825, 1
        %vm832 = vcmp.eq.s32.totalorder %v826, 1
        %vm833 = vcmp.eq.s32.totalorder %v827, 1
        %vm834 = vcmp.eq.s32.totalorder %v828, 1
        %v835 = vsel %vm829, 0.0, %v821
        %v836 = vsel %vm830, 0.0, %v820
        %v837 = vsel %vm831, 0.0, %v819
        %v838 = vsel %vm832, 0.0, %v818
        %v839 = vsel %vm833, 0.0, %v817
        %v840 = vsel %vm834, 0.0, %v822
        %v841 = vld [vmem:[#allocation7] sm:$0xff]
        %v842 = vld [vmem:[#allocation7 + $0x8] sm:$0x1]
        %v843 = vlaneseq
        %v844 = vshrl.u32 %v843, 7
        %v845 = vsub.s32 0, %v844
        %v846 = vrot.slane %v841, %v845
        %v847 = vmul.f32 %v798, %v846
        %v848 = vmul.f32 %v799, %v846
        %v849 = vmul.f32 %v800, %v846
        %v850 = vmul.f32 %v801, %v846
        %v851 = vlaneseq
        %v852 = vshrl.u32 %v851, 7
        %v853 = vsub.s32 1, %v852
        %v854 = vrot.slane %v841, %v853
        %v855 = vmul.f32 %v689, %v854
        %v856 = vmul.f32 %v690, %v854
        %v857 = vmul.f32 %v691, %v854
        %v858 = vmul.f32 %v692, %v854
        %v859 = vadd.f32 %v847, %v855
        %v860 = vadd.f32 %v848, %v856
        %v861 = vadd.f32 %v849, %v857
        %v862 = vadd.f32 %v850, %v858
        %v863 = vlaneseq
        %v864 = vshrl.u32 %v863, 7
        %v865 = vsub.s32 2, %v864
        %v866 = vrot.slane %v841, %v865
        %v867 = vmul.f32 %v835, %v866
        %v868 = vmul.f32 %v836, %v866
        %v869 = vmul.f32 %v837, %v866
        %v870 = vmul.f32 %v838, %v866
        %v871 = vadd.f32 %v859, %v867
        %v872 = vadd.f32 %v860, %v868
        %v873 = vadd.f32 %v861, %v869
        %v874 = vadd.f32 %v862, %v870
        %v875 = vlaneseq
        %v876 = vshrl.u32 %v875, 7
        %v877 = vsub.s32 3, %v876
        %v878 = vrot.slane %v841, %v877
        %v879 = vmul.f32 %v799, %v878
        %v880 = vmul.f32 %v800, %v878
        %v881 = vmul.f32 %v801, %v878
        %v882 = vmul.f32 %v802, %v878
        %v883 = vadd.f32 %v871, %v879
        %v884 = vadd.f32 %v872, %v880
        %v885 = vadd.f32 %v873, %v881
        %v886 = vadd.f32 %v874, %v882
        %v887 = vlaneseq
        %v888 = vshrl.u32 %v887, 7
        %v889 = vsub.s32 4, %v888
        %v890 = vrot.slane %v841, %v889
        %v891 = vmul.f32 %v690, %v890
        %v892 = vmul.f32 %v691, %v890
        %v893 = vmul.f32 %v692, %v890
        %v894 = vmul.f32 %v693, %v890
        %v895 = vadd.f32 %v883, %v891
        %v896 = vadd.f32 %v884, %v892
        %v897 = vadd.f32 %v885, %v893
        %v898 = vadd.f32 %v886, %v894
        %v899 = vlaneseq
        %v900 = vshrl.u32 %v899, 7
        %v901 = vsub.s32 5, %v900
        %v902 = vrot.slane %v841, %v901
        %v903 = vmul.f32 %v836, %v902
        %v904 = vmul.f32 %v837, %v902
        %v905 = vmul.f32 %v838, %v902
        %v906 = vmul.f32 %v839, %v902
        %v907 = vadd.f32 %v895, %v903
        %v908 = vadd.f32 %v896, %v904
        %v909 = vadd.f32 %v897, %v905
        %v910 = vadd.f32 %v898, %v906
        %v911 = vlaneseq
        %v912 = vshrl.u32 %v911, 7
        %v913 = vsub.s32 6, %v912
        %v914 = vrot.slane %v841, %v913
        %v915 = vmul.f32 %v800, %v914
        %v916 = vmul.f32 %v801, %v914
        %v917 = vmul.f32 %v802, %v914
        %v918 = vmul.f32 %v803, %v914
        %v919 = vadd.f32 %v907, %v915
        %v920 = vadd.f32 %v908, %v916
        %v921 = vadd.f32 %v909, %v917
        %v922 = vadd.f32 %v910, %v918
        %v923 = vlaneseq
        %v924 = vshrl.u32 %v923, 7
        %v925 = vsub.s32 7, %v924
        %v926 = vrot.slane %v841, %v925
        %v927 = vmul.f32 %v691, %v926
        %v928 = vmul.f32 %v692, %v926
        %v929 = vmul.f32 %v693, %v926
        %v930 = vmul.f32 %v694, %v926
        %v931 = vadd.f32 %v919, %v927
        %v932 = vadd.f32 %v920, %v928
        %v933 = vadd.f32 %v921, %v929
        %v934 = vadd.f32 %v922, %v930
        %v935 = vlaneseq
        %v936 = vshrl.u32 %v935, 7
        %v937 = vsub.s32 0, %v936
        %v938 = vrot.slane %v842, %v937
        %v939 = vmul.f32 %v837, %v938
        %v940 = vmul.f32 %v838, %v938
        %v941 = vmul.f32 %v839, %v938
        %v942 = vmul.f32 %v840, %v938
        %v943 = vadd.f32 %v931, %v939
        %v944 = vadd.f32 %v932, %v940
        %v945 = vadd.f32 %v933, %v941
        %v946 = vadd.f32 %v934, %v942
        %v947 = vld [vmem:[%s6] sm:$0x1]
        %v949 = vlaneseq
        %v950 = vshrl.u32 %v949, 7
        %v951 = vsub.s32 0, %v950
        %v952 = vrot.slane %v947, %v951
        %v954 = vadd.f32 %v943, %v952
        %v955 = vadd.f32 %v944, %v952
        %v956 = vadd.f32 %v945, %v952
        %v957 = vadd.f32 %v946, %v952
        %v958 = vmul.f32 %v954, 0.5
        %v959 = vmul.f32 %v955, 0.5
        %v960 = vmul.f32 %v956, 0.5
        %v961 = vmul.f32 %v957, 0.5
        %v962 = vmul.f32 %v954, 0.70710677
        %v963 = vmul.f32 %v955, 0.70710677
        %v964 = vmul.f32 %v956, 0.70710677
        %v965 = vmul.f32 %v957, 0.70710677
        %v966 = verf.f32.pop %v962
        %v967 = verf.f32.pop %v963
        %v968 = verf.f32.pop %v964
        %v969 = verf.f32.pop %v965
        %v970 = vadd.f32 %v966, 1.0
        %v971 = vadd.f32 %v967, 1.0
        %v972 = vadd.f32 %v968, 1.0
        %v973 = vadd.f32 %v969, 1.0
        %v974 = vmul.f32 %v958, %v970
        %v975 = vmul.f32 %v959, %v971
        %v976 = vmul.f32 %v960, %v972
        %v977 = vmul.f32 %v961, %v973
        %v978 = vld [vmem:[%s7] sm:$0xff]
        %v979 = vld [vmem:[%s7 + $0x8] sm:$0xff]
        %v980 = vld [vmem:[%s7 + $0x10] sm:$0xff]
        %v981 = vld [vmem:[%s7 + $0x18] sm:$0xff]
        %v982 = vld [vmem:[%s7 + $0x20] sm:$0xff]
        %v983 = vld [vmem:[%s7 + $0x28] sm:$0xff]
        %v984 = vld [vmem:[%s7 + $0x30] sm:$0xff]
        %v985 = vld [vmem:[%s7 + $0x38] sm:$0xff]
        %v986 = vld [vmem:[%s7 + $0x40] sm:$0xff]
        %v987 = vld [vmem:[%s7 + $0x48] sm:$0xff]
        %v988 = vld [vmem:[%s7 + $0x50] sm:$0xff]
        %v989 = vld [vmem:[%s7 + $0x58] sm:$0xff]
        %v990 = vld [vmem:[%s7 + $0x60] sm:$0xff]
        %v991 = vld [vmem:[%s7 + $0x68] sm:$0xff]
        %v992 = vld [vmem:[%s7 + $0x70] sm:$0xff]
        %v993 = vld [vmem:[%s7 + $0x78] sm:$0xff]
        %v994 = vld [vmem:[%s8] sm:$0x1]
        %v996 = vlaneseq
        %v997 = vshrl.u32 %v996, 7
        %v998 = vsub.s32 0, %v997
        %v999 = vrot.slane %v994, %v998
        %1001 = vmatprep.subr.mxu0 0.0
        %1002 = vmatpush1.msra.mxu0 %v993
        %1003 = vmatprep.subr.mxu0 0.0
        %1004 = vmatpush1.msra.mxu0 %v992
        %1005 = vmatprep.subr.mxu0 0.0
        %1006 = vmatpush1.msra.mxu0 %v991
        %1007 = vmatprep.subr.mxu0 0.0
        %1008 = vmatpush1.msra.mxu0 %v990
        %1009 = vmatprep.subr.mxu0 0.0
        %1010 = vmatpush1.msra.mxu0 %v989
        %1011 = vmatprep.subr.mxu0 0.0
        %1012 = vmatpush1.msra.mxu0 %v988
        %1013 = vmatprep.subr.mxu0 0.0
        %1014 = vmatpush1.msra.mxu0 %v987
        %1015 = vmatprep.subr.mxu0 0.0
        %1016 = vmatpush1.msra.mxu0 %v986
        %1017 = vmatprep.subr.mxu0 0.0
        %1018 = vmatpush1.msra.mxu0 %v985
        %1019 = vmatprep.subr.mxu0 0.0
        %1020 = vmatpush1.msra.mxu0 %v984
        %1021 = vmatprep.subr.mxu0 0.0
        %1022 = vmatpush1.msra.mxu0 %v983
        %1023 = vmatprep.subr.mxu0 0.0
        %1024 = vmatpush1.msra.mxu0 %v982
        %1025 = vmatprep.subr.mxu0 0.0
        %1026 = vmatpush1.msra.mxu0 %v981
        %1027 = vmatprep.subr.mxu0 0.0
        %1028 = vmatpush1.msra.mxu0 %v980
        %1029 = vmatprep.subr.mxu0 0.0
        %1030 = vmatpush1.msra.mxu0 %v979
        %1031 = vmatprep.subr.mxu0 0.0
        %1032 = vmatpush1.msra.mxu0 %v978
        %1033 = vmatprep.subr.mxu0 0.0
        %1034 = vmatpush2.msra.mxu0 0.0
        %1035 = vmatprep.subr.mxu0 0.0
        %1036 = vmatpush2.msra.mxu0 0.0
        %1037 = vmatprep.subr.mxu0 0.0
        %1038 = vmatpush2.msra.mxu0 0.0
        %1039 = vmatprep.subr.mxu0 0.0
        %1040 = vmatpush2.msra.mxu0 0.0
        %1041 = vmatprep.subr.mxu0 0.0
        %1042 = vmatpush2.msra.mxu0 0.0
        %1043 = vmatprep.subr.mxu0 0.0
        %1044 = vmatpush2.msra.mxu0 0.0
        %1045 = vmatprep.subr.mxu0 0.0
        %1046 = vmatpush2.msra.mxu0 0.0
        %1047 = vmatprep.subr.mxu0 0.0
        %1048 = vmatpush2.msra.mxu0 0.0
        %1049 = vmatprep.subr.mxu0 0.0
        %1050 = vmatpush2.msra.mxu0 0.0
        %1051 = vmatprep.subr.mxu0 0.0
        %1052 = vmatpush2.msra.mxu0 0.0
        %1053 = vmatprep.subr.mxu0 0.0
        %1054 = vmatpush2.msra.mxu0 0.0
        %1055 = vmatprep.subr.mxu0 0.0
        %1056 = vmatpush2.msra.mxu0 0.0
        %1057 = vmatprep.subr.mxu0 0.0
        %1058 = vmatpush2.msra.mxu0 0.0
        %1059 = vmatprep.subr.mxu0 0.0
        %1060 = vmatpush2.msra.mxu0 0.0
        %1061 = vmatprep.subr.mxu0 0.0
        %1062 = vmatpush2.msra.mxu0 0.0
        %1063 = vmatprep.subr.mxu0 0.0
        %1064 = vmatpush2.msra.mxu0 0.0
        %1065 = vmatprep.mubr.f32.mxu0 0.0
        %1066 = vmatmul.mubr.f32.gmra.mxu0 %v974
        %v1067 = vpop.f32.mrf.mxu0
        %v1068 = vadd.f32 %v999, %v1067
        %v1069 = vpop.f32.mrf.mxu0
        %1070 = vmatprep.mubr.f32.mxu0 0.0
        %1071 = vmatmul.mubr.f32.gmra.mxu0 %v975
        %v1072 = vpop.f32.mrf.mxu0
        %v1073 = vadd.f32 %v999, %v1072
        %v1074 = vpop.f32.mrf.mxu0
        %1075 = vmatprep.mubr.f32.mxu0 0.0
        %1076 = vmatmul.mubr.f32.gmra.mxu0 %v976
        %v1077 = vpop.f32.mrf.mxu0
        %v1078 = vadd.f32 %v999, %v1077
        %v1079 = vpop.f32.mrf.mxu0
        %1080 = vmatprep.mubr.f32.mxu0 0.0
        %1081 = vmatmul.mubr.f32.gmra.mxu0 %v977
        %v1082 = vpop.f32.mrf.mxu0
        %v1083 = vadd.f32 %v999, %v1082
        %v1084 = vpop.f32.mrf.mxu0
        %1085 = vdwg.mxu0
        %1086 = vst.msk [vmem:[%s478] sm:$0xff] %vm518, %v1068
        %1087 = vst.msk [vmem:[%s478 + $0x8] sm:$0xff] %vm518, %v1073
        %1088 = vst.msk [vmem:[%s478 + $0x10] sm:$0xff] %vm518, %v1078
        %1089 = vst.msk [vmem:[%s478 + $0x18] sm:$0xff] %vm518, %v1083
        %s1090 = sand.u32 %s277, 1
        %s1091 = scalar_lea.sflag [#allocation4], %s1090
        %s1092 = sand.u32 %s277, 1
        %s1093 = smul.addr %s1092, 32
        %s1094 = scalar_lea.vmem [#allocation8], %s1093
        // Predicated region
        $region69: #{tpu_custom_call.1} parent=55 // pred_check
          %p1095 = pneg %p287
        $region70: #{tpu_custom_call.1} parent=55 // pred_check_branch
          %1097 = sbr.rel (%p1095) target = $region72
        $region71: #{tpu_custom_call.1} parent=55 // pred_region
          %s1098 = smul.u32 4, %s34
          %s1100 = ssub.s32 512, 512
          %1101 = vsyncadd %s1091, %s1100
          %s1102 = smul.addr %s33, 8
          %s1103 = sadd.s32 %s1098, %s1102
          %s1104 = smul.addr %s1103, 128
          %s1105 = scalar_lea.hbm %s9, %s1104
          %s1106 = sshll.u32 %s1094, 4
          %s1107 = int_to_ptr.vmem [resolvable:$true] %s1106
          %1112 = dma.vmem_to_hbm [thread:$0]  %s1107, 512, %s1105, %s1091, 128, 128, 8
        $region72: #{tpu_custom_call.1} parent=55 // pred_fallthru
          _
      $region56: #{tpu_custom_call.1} parent=5 // pred_fallthru
        _
      %p1113 = scmp.le.s32.totalorder 2, %s24
      // Predicated region
      $region73: #{tpu_custom_call.1} parent=5 // pred_check
        %p1114 = pneg %p1113
      $region74: #{tpu_custom_call.1} parent=5 // pred_check_branch
        %1116 = sbr.rel (%p1114) target = $region76
      $region75: #{tpu_custom_call.1} parent=5 // pred_region
        %s1117 = ssub.s32 %s24, 2
        // Predicated region
        $region77: #{tpu_custom_call.1} parent=75 // pred_check
          %p1118 = pneg %p293
        $region78: #{tpu_custom_call.1} parent=75 // pred_check_branch
          %1120 = sbr.rel (%p1118) target = $region80
        $region79: #{tpu_custom_call.1} parent=75 // pred_region
          %s1121 = sand.u32 %s278, 1
          %s1122 = scalar_lea.sflag [#allocation4], %s1121
          %s1123 = sand.u32 %s278, 1
          %s1124 = smul.addr %s1123, 32
          %s1125 = scalar_lea.vmem [#allocation8], %s1124
          %1126 = dma.done %s1122, 512
        $region80: #{tpu_custom_call.1} parent=75 // pred_fallthru
          _
      $region76: #{tpu_custom_call.1} parent=5 // pred_fallthru
        _
    $region6: #{tpu_custom_call.1} parent=1 // loop_footer
      %s28 = sadd.s32 1, %s24
    $region7: #{tpu_custom_call.1} parent=1 // loop_footer_branch
      %23 = sbr.rel target = $region3
    $region8: #{tpu_custom_call.1} parent=1 // loop_exit
      _
    %1127 = vsyncpa [#allocation3], 1
    %s1128 = scalar_lea.sflag [#allocation3], 1
    %1129 = vsyncpa %s1128, 1
    %1130 = vsyncpa [#allocation6], 1
    %s1131 = scalar_lea.sflag [#allocation6], 1
    %1132 = vsyncpa %s1131, 1
    %1133 = vsyncpa [#allocation4], 1
    %s1134 = scalar_lea.sflag [#allocation4], 1
    %1135 = vsyncpa %s1134, 1

// kernel: tpu_custom_call.1
$region0: #{tpu_custom_call.1}
  #allocation0 [shape = 'u32[]', space=smem, size = 0x4, offset = 0x4, fixed_abs, tag = 'smem constant byte address 0x4 - core index']
  #allocation1 [shape = 'u32[144,128]{1,0:T(1,128)}', space=vmem, size = 0x12000, scoped, tag = 'internal scratch']
  %s0 = inlined_call_operand.vmem [shape: f32[2,8,8,32], index: 0, kind: input, shape index: {}]
  %s1 = inlined_call_operand.hbm [shape: f32[2,8,8,32], index: 1, kind: input, shape index: {}]
  %s2 = inlined_call_operand.hbm [shape: f32[2,8,8,32], index: 2, kind: input, shape index: {}]
  %s3 = inlined_call_operand.vmem [shape: f32[32,128], index: 3, kind: input, shape index: {}]
  %s4 = inlined_call_operand.vmem [shape: f32[1,128], index: 4, kind: input, shape index: {}]
  %s5 = inlined_call_operand.hbm [shape: f32[9,128], index: 5, kind: input, shape index: {}]
  %s6 = inlined_call_operand.vmem [shape: f32[1,128], index: 6, kind: input, shape index: {}]
  %s7 = inlined_call_operand.vmem [shape: f32[128,32], index: 7, kind: input, shape index: {}]
  %s8 = inlined_call_operand.vmem [shape: f32[1,32], index: 8, kind: input, shape index: {}]
  %s9 = inlined_call_operand.hbm [shape: f32[2,8,8,32], index: 9, kind: output, shape index: {}]
  %s10 = sld [smem:[#allocation0]]
  $region81: #{tpu_custom_call.1} parent=0
    _
  %s12 = ssub.s32 1, %s10
  %s13 = scalar_select 0, %s12, %s10
  $region1: #{tpu_custom_call.1} parent=0
    #allocation2 [shape = 'u8[32768]{0}', space=vmem, size = 0x8000, scoped, tag = 'input window, operand 1']
    #allocation3 [shape = 's32[2]{0}', space=sflag, size = 0x8, scoped, tag = 'scoped memory for tpu_custom_call.1']
    #allocation4 [shape = 's32[2]{0}', space=sflag, size = 0x8, scoped, tag = 'scoped memory for tpu_custom_call.1']
    #allocation5 [shape = 'u8[8192]{0}', space=vmem, size = 0x2000, scoped, tag = 'input window, operand 2']
    #allocation6 [shape = 's32[2]{0}', space=sflag, size = 0x8, scoped, tag = 'scoped memory for tpu_custom_call.1']
    #allocation7 [shape = 'u8[8192]{0}', space=vmem, size = 0x2000, scoped, tag = 'input window, operand 5, single buffered']
    #allocation8 [shape = 'u8[32768]{0}', space=vmem, size = 0x8000, scoped, tag = 'output window, operand 0']
    %14 = vsyncpa [#allocation3], 0
    %s15 = scalar_lea.sflag [#allocation3], 1
    %16 = vsyncpa %s15, 0
    %17 = vsyncpa [#allocation6], 0
    %s18 = scalar_lea.sflag [#allocation6], 1
    %19 = vsyncpa %s18, 0
    %20 = vsyncpa [#allocation4], 0
    %s21 = scalar_lea.sflag [#allocation4], 1
    %22 = vsyncpa %s21, 0
    loop: start=0, step=1, limit=6
    $region2: #{tpu_custom_call.1} parent=1 // loop_pre_header
      _
    $region3: #{tpu_custom_call.1} parent=1 // loop_header
      %s24 = sphi 0, %s28
      %p25 = scmp.ge.s32.totalorder %s24, 6
      %s31 = sphi 0, %s43
      %s32 = sphi 0, %s39
      %s33 = sphi 0, %s31
      %s34 = sphi 0, %s32
      %s35 = sphi 0, %s33
      %s36 = sphi 0, %s34
      %s56 = sphi 0, %s58
      %s59 = sphi 0, %s56
      %s60 = sphi 0, %s59
      %s76 = sphi 0, %s60
      %s84 = sphi 0, %s86
      %s87 = sphi 0, %s84
      %s88 = sphi 0, %s87
      %s104 = sphi 0, %s88
      %s120 = sphi 0, %s122
      %s123 = sphi 0, %s120
      %s124 = sphi 0, %s123
      %s140 = sphi 0, %s124
      %s144 = sphi 0, %s144
      %s146 = sphi 0, %s144
      %s147 = sphi 0, %s146
      %s161 = sphi 0, %s147
      %s165 = sphi 0, %s165
      %s167 = sphi 0, %s165
      %s168 = sphi 0, %s167
      %s182 = sphi 0, %s168
      %s186 = sphi 0, %s186
      %s188 = sphi 0, %s186
      %s189 = sphi 0, %s188
      %s203 = sphi 0, %s189
      %s207 = sphi 0, %s207
      %s209 = sphi 0, %s207
      %s210 = sphi 0, %s209
      %s224 = sphi 0, %s210
      %s228 = sphi 0, %s228
      %s230 = sphi 0, %s228
      %s231 = sphi 0, %s230
      %s245 = sphi 0, %s231
      %s249 = sphi 0, %s249
      %s251 = sphi 0, %s249
      %s252 = sphi 0, %s251
      %s266 = sphi 0, %s252
      %s274 = sphi 0, %s276
      %s277 = sphi 0, %s274
      %s278 = sphi 0, %s277
      %s294 = sphi 0, %s278
    $region4: #{tpu_custom_call.1} parent=1 // loop_header_branch
      %27 = sbr.rel (%p25) target = $region8
    $region5: #{tpu_custom_call.1} parent=1 // loop_body
      %s29 = ssub.s32 %s24, 1
      %s30 = ssub.s32 %s24, 2
      %s37 = sadd.s32 1, %s32
      %p38 = scmp.ge.s32.totalorder %s37, 2
      %s39 = scalar_select %p38, 0, %s37
      %s40 = sadd.s32 1, %s31
      %s41 = scalar_select %p38, %s40, %s31
      %p42 = scmp.ge.s32.totalorder %s41, 2
      %s43 = scalar_select %p42, 0, %s41
      %s44 = smul.u32 %s32, 4
      %s45 = ssub.s32 %s44, 1
      %p46 = scmp.gt.s32.totalorder %s45, 0
      %s47 = scalar_select %p46, %s45, 0
      %s48 = smul.u32 %s39, 4
      %s49 = ssub.s32 %s48, 1
      %p50 = scmp.gt.s32.totalorder %s49, 0
      %s51 = scalar_select %p50, %s49, 0
      %s52 = ssub.s32 %s31, %s43
      %s53 = ssub.s32 %s47, %s51
      %s54 = sor.u32 %s52, %s53
      %p55 = scmp.eq.s32.totalorder %s54, 0
      %s57 = sadd.s32 %s56, 1
      %s58 = scalar_select %p55, %s56, %s57
      %p61 = pneg %p55
      %p62 = scmp.eq.s32.totalorder %s24, 3
      %p63 = por %p61, %p62
      %p64 = scmp.ne.s32.totalorder %s56, %s59
      %p65 = scmp.eq.s32.totalorder %s24, 0
      %p66 = por %p64, %p65
      %p67 = scmp.ne.s32.totalorder %s56, %s59
      %p68 = scmp.eq.s32.totalorder %s29, 3
      %p69 = por %p67, %p68
      %p70 = scmp.ne.s32.totalorder %s59, %s60
      %p71 = scmp.eq.s32.totalorder %s29, 0
      %p72 = por %p70, %p71
      %p73 = scmp.ne.s32.totalorder %s59, %s60
      %p74 = scmp.eq.s32.totalorder %s30, 3
      %p75 = por %p73, %p74
      %p77 = scmp.ne.s32.totalorder %s60, %s76
      %p78 = scmp.eq.s32.totalorder %s30, 0
      %p79 = por %p77, %p78
      %s80 = ssub.s32 %s31, %s43
      %s81 = ssub.s32 %s32, %s39
      %s82 = sor.u32 %s80, %s81
      %p83 = scmp.eq.s32.totalorder %s82, 0
      %s85 = sadd.s32 %s84, 1
      %s86 = scalar_select %p83, %s84, %s85
      %p89 = pneg %p83
      %p90 = scmp.eq.s32.totalorder %s24, 3
      %p91 = por %p89, %p90
      %p92 = scmp.ne.s32.totalorder %s84, %s87
      %p93 = scmp.eq.s32.totalorder %s24, 0
      %p94 = por %p92, %p93
      %p95 = scmp.ne.s32.totalorder %s84, %s87
      %p96 = scmp.eq.s32.totalorder %s29, 3
      %p97 = por %p95, %p96
      %p98 = scmp.ne.s32.totalorder %s87, %s88
      %p99 = scmp.eq.s32.totalorder %s29, 0
      %p100 = por %p98, %p99
      %p101 = scmp.ne.s32.totalorder %s87, %s88
      %p102 = scmp.eq.s32.totalorder %s30, 3
      %p103 = por %p101, %p102
      %p105 = scmp.ne.s32.totalorder %s88, %s104
      %p106 = scmp.eq.s32.totalorder %s30, 0
      %p107 = por %p105, %p106
      %s108 = smul.u32 %s32, 4
      %s109 = sadd.s32 %s108, 4
      %p110 = scmp.lt.s32.totalorder %s109, 7
      %s111 = scalar_select %p110, %s109, 7
      %s112 = smul.u32 %s39, 4
      %s113 = sadd.s32 %s112, 4
      %p114 = scmp.lt.s32.totalorder %s113, 7
      %s115 = scalar_select %p114, %s113, 7
      %s116 = ssub.s32 %s31, %s43
      %s117 = ssub.s32 %s111, %s115
      %s118 = sor.u32 %s116, %s117
      %p119 = scmp.eq.s32.totalorder %s118, 0
      %s121 = sadd.s32 %s120, 1
      %s122 = scalar_select %p119, %s120, %s121
      %p125 = pneg %p119
      %p126 = scmp.eq.s32.totalorder %s24, 3
      %p127 = por %p125, %p126
      %p128 = scmp.ne.s32.totalorder %s120, %s123
      %p129 = scmp.eq.s32.totalorder %s24, 0
      %p130 = por %p128, %p129
      %p131 = scmp.ne.s32.totalorder %s120, %s123
      %p132 = scmp.eq.s32.totalorder %s29, 3
      %p133 = por %p131, %p132
      %p134 = scmp.ne.s32.totalorder %s123, %s124
      %p135 = scmp.eq.s32.totalorder %s29, 0
      %p136 = por %p134, %p135
      %p137 = scmp.ne.s32.totalorder %s123, %s124
      %p138 = scmp.eq.s32.totalorder %s30, 3
      %p139 = por %p137, %p138
      %p141 = scmp.ne.s32.totalorder %s124, %s140
      %p142 = scmp.eq.s32.totalorder %s30, 0
      %p143 = por %p141, %p142
      %s145 = sadd.s32 %s144, 1
      %p148 = scmp.eq.s32.totalorder %s24, 3
      %p149 = scmp.ne.s32.totalorder %s144, %s146
      %p150 = scmp.eq.s32.totalorder %s24, 0
      %p151 = por %p149, %p150
      %p152 = scmp.ne.s32.totalorder %s144, %s146
      %p153 = scmp.eq.s32.totalorder %s29, 3
      %p154 = por %p152, %p153
      %p155 = scmp.ne.s32.totalorder %s146, %s147
      %p156 = scmp.eq.s32.totalorder %s29, 0
      %p157 = por %p155, %p156
      %p158 = scmp.ne.s32.totalorder %s146, %s147
      %p159 = scmp.eq.s32.totalorder %s30, 3
      %p160 = por %p158, %p159
      %p162 = scmp.ne.s32.totalorder %s147, %s161
      %p163 = scmp.eq.s32.totalorder %s30, 0
      %p164 = por %p162, %p163
      %s166 = sadd.s32 %s165, 1
      %p169 = scmp.eq.s32.totalorder %s24, 3
      %p170 = scmp.ne.s32.totalorder %s165, %s167
      %p171 = scmp.eq.s32.totalorder %s24, 0
      %p172 = por %p170, %p171
      %p173 = scmp.ne.s32.totalorder %s165, %s167
      %p174 = scmp.eq.s32.totalorder %s29, 3
      %p175 = por %p173, %p174
      %p176 = scmp.ne.s32.totalorder %s167, %s168
      %p177 = scmp.eq.s32.totalorder %s29, 0
      %p178 = por %p176, %p177
      %p179 = scmp.ne.s32.totalorder %s167, %s168
      %p180 = scmp.eq.s32.totalorder %s30, 3
      %p181 = por %p179, %p180
      %p183 = scmp.ne.s32.totalorder %s168, %s182
      %p184 = scmp.eq.s32.totalorder %s30, 0
      %p185 = por %p183, %p184
      %s187 = sadd.s32 %s186, 1
      %p190 = scmp.eq.s32.totalorder %s24, 3
      %p191 = scmp.ne.s32.totalorder %s186, %s188
      %p192 = scmp.eq.s32.totalorder %s24, 0
      %p193 = por %p191, %p192
      %p194 = scmp.ne.s32.totalorder %s186, %s188
      %p195 = scmp.eq.s32.totalorder %s29, 3
      %p196 = por %p194, %p195
      %p197 = scmp.ne.s32.totalorder %s188, %s189
      %p198 = scmp.eq.s32.totalorder %s29, 0
      %p199 = por %p197, %p198
      %p200 = scmp.ne.s32.totalorder %s188, %s189
      %p201 = scmp.eq.s32.totalorder %s30, 3
      %p202 = por %p200, %p201
      %p204 = scmp.ne.s32.totalorder %s189, %s203
      %p205 = scmp.eq.s32.totalorder %s30, 0
      %p206 = por %p204, %p205
      %s208 = sadd.s32 %s207, 1
      %p211 = scmp.eq.s32.totalorder %s24, 3
      %p212 = scmp.ne.s32.totalorder %s207, %s209
      %p213 = scmp.eq.s32.totalorder %s24, 0
      %p214 = por %p212, %p213
      %p215 = scmp.ne.s32.totalorder %s207, %s209
      %p216 = scmp.eq.s32.totalorder %s29, 3
      %p217 = por %p215, %p216
      %p218 = scmp.ne.s32.totalorder %s209, %s210
      %p219 = scmp.eq.s32.totalorder %s29, 0
      %p220 = por %p218, %p219
      %p221 = scmp.ne.s32.totalorder %s209, %s210
      %p222 = scmp.eq.s32.totalorder %s30, 3
      %p223 = por %p221, %p222
      %p225 = scmp.ne.s32.totalorder %s210, %s224
      %p226 = scmp.eq.s32.totalorder %s30, 0
      %p227 = por %p225, %p226
      %s229 = sadd.s32 %s228, 1
      %p232 = scmp.eq.s32.totalorder %s24, 3
      %p233 = scmp.ne.s32.totalorder %s228, %s230
      %p234 = scmp.eq.s32.totalorder %s24, 0
      %p235 = por %p233, %p234
      %p236 = scmp.ne.s32.totalorder %s228, %s230
      %p237 = scmp.eq.s32.totalorder %s29, 3
      %p238 = por %p236, %p237
      %p239 = scmp.ne.s32.totalorder %s230, %s231
      %p240 = scmp.eq.s32.totalorder %s29, 0
      %p241 = por %p239, %p240
      %p242 = scmp.ne.s32.totalorder %s230, %s231
      %p243 = scmp.eq.s32.totalorder %s30, 3
      %p244 = por %p242, %p243
      %p246 = scmp.ne.s32.totalorder %s231, %s245
      %p247 = scmp.eq.s32.totalorder %s30, 0
      %p248 = por %p246, %p247
      %s250 = sadd.s32 %s249, 1
      %p253 = scmp.eq.s32.totalorder %s24, 3
      %p254 = scmp.ne.s32.totalorder %s249, %s251
      %p255 = scmp.eq.s32.totalorder %s24, 0
      %p256 = por %p254, %p255
      %p257 = scmp.ne.s32.totalorder %s249, %s251
      %p258 = scmp.eq.s32.totalorder %s29, 3
      %p259 = por %p257, %p258
      %p260 = scmp.ne.s32.totalorder %s251, %s252
      %p261 = scmp.eq.s32.totalorder %s29, 0
      %p262 = por %p260, %p261
      %p263 = scmp.ne.s32.totalorder %s251, %s252
      %p264 = scmp.eq.s32.totalorder %s30, 3
      %p265 = por %p263, %p264
      %p267 = scmp.ne.s32.totalorder %s252, %s266
      %p268 = scmp.eq.s32.totalorder %s30, 0
      %p269 = por %p267, %p268
      %s270 = ssub.s32 %s31, %s43
      %s271 = ssub.s32 %s32, %s39
      %s272 = sor.u32 %s270, %s271
      %p273 = scmp.eq.s32.totalorder %s272, 0
      %s275 = sadd.s32 %s274, 1
      %s276 = scalar_select %p273, %s274, %s275
      %p279 = pneg %p273
      %p280 = scmp.eq.s32.totalorder %s24, 3
      %p281 = por %p279, %p280
      %p282 = scmp.ne.s32.totalorder %s274, %s277
      %p283 = scmp.eq.s32.totalorder %s24, 0
      %p284 = por %p282, %p283
      %p285 = scmp.ne.s32.totalorder %s274, %s277
      %p286 = scmp.eq.s32.totalorder %s29, 3
      %p287 = por %p285, %p286
      %p288 = scmp.ne.s32.totalorder %s277, %s278
      %p289 = scmp.eq.s32.totalorder %s29, 0
      %p290 = por %p288, %p289
      %p291 = scmp.ne.s32.totalorder %s277, %s278
      %p292 = scmp.eq.s32.totalorder %s30, 3
      %p293 = por %p291, %p292
      %p295 = scmp.ne.s32.totalorder %s278, %s294
      %p296 = scmp.eq.s32.totalorder %s30, 0
      %p297 = por %p295, %p296
      %p298 = scmp.le.s32.totalorder 1, %s24
      %p299 = scmp.lt.s32.totalorder %s24, 5
      %p300 = pnand %p298, %p299
      %p301 = pneg %p300
      // Predicated region
      $region9: #{tpu_custom_call.1} parent=5 // pred_check
        _
      $region10: #{tpu_custom_call.1} parent=5 // pred_check_branch
        %303 = sbr.rel (%p300) target = $region12
      $region11: #{tpu_custom_call.1} parent=5 // pred_region
        %s304 = ssub.s32 %s24, 1
        // Predicated region
        $region13: #{tpu_custom_call.1} parent=11 // pred_check
          %p305 = pneg %p157
        $region14: #{tpu_custom_call.1} parent=11 // pred_check_branch
          %307 = sbr.rel (%p305) target = $region16
        $region15: #{tpu_custom_call.1} parent=11 // pred_region
          _
        $region16: #{tpu_custom_call.1} parent=11 // pred_fallthru
          _
        // Predicated region
        $region17: #{tpu_custom_call.1} parent=11 // pred_check
          %p308 = pneg %p178
        $region18: #{tpu_custom_call.1} parent=11 // pred_check_branch
          %310 = sbr.rel (%p308) target = $region20
        $region19: #{tpu_custom_call.1} parent=11 // pred_region
          _
        $region20: #{tpu_custom_call.1} parent=11 // pred_fallthru
          _
        // Predicated region
        $region21: #{tpu_custom_call.1} parent=11 // pred_check
          %p311 = pneg %p199
        $region22: #{tpu_custom_call.1} parent=11 // pred_check_branch
          %313 = sbr.rel (%p311) target = $region24
        $region23: #{tpu_custom_call.1} parent=11 // pred_region
          %s315 = ssub.s32 256, 256
          %316 = vsyncadd [#allocation6], %s315
          %s317 = sshll.u32 [#allocation7], 4
          %s318 = int_to_ptr.vmem [resolvable:$true] %s317
          %323 = dma.hbm_to_vmem [thread:$0]  %s5, 256, %s318, [#allocation6], 128, 128, 8
        $region24: #{tpu_custom_call.1} parent=11 // pred_fallthru
          _
        // Predicated region
        $region25: #{tpu_custom_call.1} parent=11 // pred_check
          %p324 = pneg %p220
        $region26: #{tpu_custom_call.1} parent=11 // pred_check_branch
          %326 = sbr.rel (%p324) target = $region28
        $region27: #{tpu_custom_call.1} parent=11 // pred_region
          _
        $region28: #{tpu_custom_call.1} parent=11 // pred_fallthru
          _
        // Predicated region
        $region29: #{tpu_custom_call.1} parent=11 // pred_check
          %p327 = pneg %p241
        $region30: #{tpu_custom_call.1} parent=11 // pred_check_branch
          %329 = sbr.rel (%p327) target = $region32
        $region31: #{tpu_custom_call.1} parent=11 // pred_region
          _
        $region32: #{tpu_custom_call.1} parent=11 // pred_fallthru
          _
        // Predicated region
        $region33: #{tpu_custom_call.1} parent=11 // pred_check
          %p330 = pneg %p262
        $region34: #{tpu_custom_call.1} parent=11 // pred_check_branch
          %332 = sbr.rel (%p330) target = $region36
        $region35: #{tpu_custom_call.1} parent=11 // pred_region
          _
        $region36: #{tpu_custom_call.1} parent=11 // pred_fallthru
          _
      $region12: #{tpu_custom_call.1} parent=5 // pred_fallthru
        _
      %p333 = scmp.lt.s32.totalorder %s24, 4
      // Predicated region
      $region37: #{tpu_custom_call.1} parent=5 // pred_check
        %p334 = pneg %p333
      $region38: #{tpu_custom_call.1} parent=5 // pred_check_branch
        %336 = sbr.rel (%p334) target = $region40
      $region39: #{tpu_custom_call.1} parent=5 // pred_region
        // Predicated region
        $region41: #{tpu_custom_call.1} parent=39 // pred_check
          %p337 = pneg %p66
        $region42: #{tpu_custom_call.1} parent=39 // pred_check_branch
          %339 = sbr.rel (%p337) target = $region44
        $region43: #{tpu_custom_call.1} parent=39 // pred_region
          %s340 = smul.u32 %s32, 4
          %s341 = ssub.s32 %s340, 1
          %p342 = scmp.gt.s32.totalorder %s341, 0
          %s343 = scalar_select %p342, %s341, 0
          %p344 = scmp.lt.s32.totalorder %s31, 1
          %s345 = scalar_select %p344, %s31, 1
          %p346 = scmp.lt.s32.totalorder %s343, 7
          %s347 = scalar_select %p346, %s343, 7
          %s348 = smul.addr %s345, 8
          %s349 = sadd.s32 %s347, %s348
          %s350 = smul.addr %s349, 8
          %s351 = scalar_lea.vmem %s0, %s350
          %s352 = smul.u32 %s32, 4
          %s353 = ssub.s32 %s352, 1
          %p354 = scmp.gt.s32.totalorder %s353, 0
          %s355 = scalar_select %p354, %s353, 0
        $region44: #{tpu_custom_call.1} parent=39 // pred_fallthru
          _
        // Predicated region
        $region45: #{tpu_custom_call.1} parent=39 // pred_check
          %p356 = pneg %p94
        $region46: #{tpu_custom_call.1} parent=39 // pred_check_branch
          %358 = sbr.rel (%p356) target = $region48
        $region47: #{tpu_custom_call.1} parent=39 // pred_region
          %s359 = sand.u32 %s84, 1
          %s360 = scalar_lea.sflag [#allocation3], %s359
          %s361 = sand.u32 %s84, 1
          %s362 = smul.addr %s361, 32
          %s363 = scalar_lea.vmem [#allocation2], %s362
          %s364 = smul.u32 4, %s32
          %s366 = ssub.s32 512, 512
          %367 = vsyncadd %s360, %s366
          %s368 = smul.addr %s31, 8
          %s369 = sadd.s32 %s364, %s368
          %s370 = smul.addr %s369, 128
          %s371 = scalar_lea.hbm %s1, %s370
          %s372 = sshll.u32 %s363, 4
          %s373 = int_to_ptr.vmem [resolvable:$true] %s372
          %378 = dma.hbm_to_vmem [thread:$0]  %s371, 512, %s373, %s360, 128, 128, 8
        $region48: #{tpu_custom_call.1} parent=39 // pred_fallthru
          _
        // Predicated region
        $region49: #{tpu_custom_call.1} parent=39 // pred_check
          %p379 = pneg %p130
        $region50: #{tpu_custom_call.1} parent=39 // pred_check_branch
          %381 = sbr.rel (%p379) target = $region52
        $region51: #{tpu_custom_call.1} parent=39 // pred_region
          %s382 = sand.u32 %s24, 1
          %s383 = scalar_lea.sflag [#allocation6], %s382
          %s384 = sand.u32 %s120, 1
          %s385 = smul.addr %s384, 8
          %s386 = scalar_lea.vmem [#allocation5], %s385
          %s387 = smul.u32 %s32, 4
          %s388 = sadd.s32 %s387, 4
          %p389 = scmp.lt.s32.totalorder %s388, 7
          %s390 = scalar_select %p389, %s388, 7
          %s392 = ssub.s32 128, 128
          %393 = vsyncadd %s383, %s392
          %s394 = smul.addr %s31, 8
          %s395 = sadd.s32 %s390, %s394
          %s396 = smul.addr %s395, 128
          %s397 = scalar_lea.hbm %s2, %s396
          %s399 = sshll.u32 %s386, 4
          %s400 = int_to_ptr.vmem [resolvable:$true] %s399
          %402 = dma.hbm_to_vmem [thread:$0]  %s397, 128, %s400, %s383
        $region52: #{tpu_custom_call.1} parent=39 // pred_fallthru
          _
      $region40: #{tpu_custom_call.1} parent=5 // pred_fallthru
        _
      %p403 = scmp.le.s32.totalorder 1, %s24
      %p404 = scmp.lt.s32.totalorder %s24, 5
      %p405 = pnand %p403, %p404
      %p406 = pneg %p405
      // Predicated region
      $region53: #{tpu_custom_call.1} parent=5 // pred_check
        _
      $region54: #{tpu_custom_call.1} parent=5 // pred_check_branch
        %408 = sbr.rel (%p405) target = $region56
      $region55: #{tpu_custom_call.1} parent=5 // pred_region
        %s409 = ssub.s32 %s24, 1
        %s410 = sand.u32 %s87, 1
        %s411 = scalar_lea.sflag [#allocation3], %s410
        %s412 = sand.u32 %s87, 1
        %s413 = smul.addr %s412, 32
        %s414 = scalar_lea.vmem [#allocation2], %s413
        // Predicated region
        $region57: #{tpu_custom_call.1} parent=55 // pred_check
          %p415 = pneg %p100
        $region58: #{tpu_custom_call.1} parent=55 // pred_check_branch
          %417 = sbr.rel (%p415) target = $region60
        $region59: #{tpu_custom_call.1} parent=55 // pred_region
          %418 = dma.done %s411, 512
        $region60: #{tpu_custom_call.1} parent=55 // pred_fallthru
          _
        %s419 = sand.u32 %s29, 1
        %s420 = scalar_lea.sflag [#allocation6], %s419
        %s421 = sand.u32 %s123, 1
        %s422 = smul.addr %s421, 8
        %s423 = scalar_lea.vmem [#allocation5], %s422
        // Predicated region
        $region61: #{tpu_custom_call.1} parent=55 // pred_check
          %p424 = pneg %p136
        $region62: #{tpu_custom_call.1} parent=55 // pred_check_branch
          %426 = sbr.rel (%p424) target = $region64
        $region63: #{tpu_custom_call.1} parent=55 // pred_region
          %427 = dma.done %s420, 128
        $region64: #{tpu_custom_call.1} parent=55 // pred_fallthru
          _
        // Predicated region
        $region65: #{tpu_custom_call.1} parent=55 // pred_check
          %p428 = pneg %p199
        $region66: #{tpu_custom_call.1} parent=55 // pred_check_branch
          %430 = sbr.rel (%p428) target = $region68
        $region67: #{tpu_custom_call.1} parent=55 // pred_region
          %431 = dma.done [#allocation6], 256
        $region68: #{tpu_custom_call.1} parent=55 // pred_fallthru
          _
        %s432 = smul.u32 %s34, 4
        %s433 = ssub.s32 %s432, 1
        %p434 = scmp.gt.s32.totalorder %s433, 0
        %s435 = scalar_select %p434, %s433, 0
        %p436 = scmp.lt.s32.totalorder %s33, 1
        %s437 = scalar_select %p436, %s33, 1
        %p438 = scmp.lt.s32.totalorder %s435, 7
        %s439 = scalar_select %p438, %s435, 7
        %s440 = smul.addr %s437, 8
        %s441 = sadd.s32 %s439, %s440
        %s442 = smul.addr %s441, 8
        %s443 = scalar_lea.vmem %s0, %s442
        %p444 = pneg %p72
        %p445 = pneg %p69
        %s446 = sand.u32 %s87, 1
        %s447 = scalar_lea.sflag [#allocation3], %s446
        %s448 = sand.u32 %s87, 1
        %s449 = smul.addr %s448, 32
        %s450 = scalar_lea.vmem [#allocation2], %s449
        %p451 = pneg %p100
        %p452 = pneg %p97
        %s453 = sand.u32 %s29, 1
        %s454 = scalar_lea.sflag [#allocation6], %s453
        %s455 = sand.u32 %s123, 1
        %s456 = smul.addr %s455, 8
        %s457 = scalar_lea.vmem [#allocation5], %s456
        %p458 = pneg %p136
        %p459 = pneg %p133
        %p460 = pneg %p157
        %p461 = pneg %p154
        %p462 = pneg %p178
        %p463 = pneg %p175
        %p464 = pneg %p199
        %p465 = pneg %p196
        %p466 = pneg %p220
        %p467 = pneg %p217
        %p468 = pneg %p241
        %p469 = pneg %p238
        %p470 = pneg %p262
        %p471 = pneg %p259
        %p472 = pneg %p290
        %p473 = pneg %p287
        %s474 = sand.u32 %s277, 1
        %s475 = scalar_lea.sflag [#allocation4], %s474
        %s476 = sand.u32 %s277, 1
        %s477 = smul.addr %s476, 32
        %s478 = scalar_lea.vmem [#allocation8], %s477
        %s479 = smul.u32 %s34, 4
        %s480 = ssub.s32 %s479, 1
        %p481 = scmp.gt.s32.totalorder %s480, 0
        %s482 = scalar_select %p481, %s480, 0
        %p483 = scmp.lt.s32.totalorder %s33, 1
        %s484 = scalar_select %p483, %s33, 1
        %p485 = scmp.lt.s32.totalorder %s482, 7
        %s486 = scalar_select %p485, %s482, 7
        %s487 = smul.addr %s484, 8
        %s488 = sadd.s32 %s486, %s487
        %s489 = smul.addr %s488, 8
        %s490 = scalar_lea.vmem %s0, %s489
        %s491 = smul.u32 %s34, 4
        %s492 = ssub.s32 %s491, 1
        %p493 = scmp.gt.s32.totalorder %s492, 0
        %s494 = scalar_select %p493, %s492, 0
        %s495 = smul.u32 4, %s34
        %s496 = smul.u32 %s34, 4
        %s497 = sadd.s32 %s496, 4
        %p498 = scmp.lt.s32.totalorder %s497, 7
        %s499 = scalar_select %p498, %s497, 7
        %s500 = smul.u32 4, %s34
        %v501 = vld [vmem:[%s490] sm:$0xff]
        %v502 = vld [vmem:[%s414] sm:$0xff]
        %v503 = vld [vmem:[%s414 + $0x8] sm:$0xff]
        %v504 = vld [vmem:[%s414 + $0x10] sm:$0xff]
        %v505 = vld [vmem:[%s414 + $0x18] sm:$0xff]
        %v506 = vld [vmem:[%s423] sm:$0xff]
        %v507 = vld [vmem:[%s3] sm:$0xff]
        %v508 = vld [vmem:[%s3 + $0x8] sm:$0xff]
        %v509 = vld [vmem:[%s3 + $0x10] sm:$0xff]
        %v510 = vld [vmem:[%s3 + $0x18] sm:$0xff]
        %v511 = vld [vmem:[%s4] sm:$0x1]
        %v513 = vlaneseq
        %v514 = vshrl.u32 %v513, 7
        %v515 = vsub.s32 0, %v514
        %v516 = vrot.slane %v511, %v515
        %vm518 = vcmask 261120
        %v520 = vsel %vm518, %v501, 0
        %v523 = vsel %vm518, %v502, 0
        %v526 = vsel %vm518, %v503, 0
        %v529 = vsel %vm518, %v504, 0
        %v532 = vsel %vm518, %v505, 0
        %v535 = vsel %vm518, %v506, 0
        %537 = vmatprep.subr.mxu0 0.0
        %538 = vmatpush1.msra.mxu0 0.0
        %539 = vmatprep.subr.mxu0 0.0
        %540 = vmatpush1.msra.mxu0 0.0
        %541 = vmatprep.subr.mxu0 0.0
        %542 = vmatpush1.msra.mxu0 0.0
        %543 = vmatprep.subr.mxu0 0.0
        %544 = vmatpush1.msra.mxu0 0.0
        %545 = vmatprep.subr.mxu0 0.0
        %546 = vmatpush1.msra.mxu0 0.0
        %547 = vmatprep.subr.mxu0 0.0
        %548 = vmatpush1.msra.mxu0 0.0
        %549 = vmatprep.subr.mxu0 0.0
        %550 = vmatpush1.msra.mxu0 0.0
        %551 = vmatprep.subr.mxu0 0.0
        %552 = vmatpush1.msra.mxu0 0.0
        %553 = vmatprep.subr.mxu0 0.0
        %554 = vmatpush1.msra.mxu0 0.0
        %555 = vmatprep.subr.mxu0 0.0
        %556 = vmatpush1.msra.mxu0 0.0
        %557 = vmatprep.subr.mxu0 0.0
        %558 = vmatpush1.msra.mxu0 0.0
        %559 = vmatprep.subr.mxu0 0.0
        %560 = vmatpush1.msra.mxu0 0.0
        %561 = vmatprep.subr.mxu0 0.0
        %562 = vmatpush1.msra.mxu0 %v510
        %563 = vmatprep.subr.mxu0 0.0
        %564 = vmatpush1.msra.mxu0 %v509
        %565 = vmatprep.subr.mxu0 0.0
        %566 = vmatpush1.msra.mxu0 %v508
        %567 = vmatprep.subr.mxu0 0.0
        %568 = vmatpush1.msra.mxu0 %v507
        %569 = vmatprep.subr.mxu0 0.0
        %570 = vmatpush2.msra.mxu0 0.0
        %571 = vmatprep.subr.mxu0 0.0
        %572 = vmatpush2.msra.mxu0 0.0
        %573 = vmatprep.subr.mxu0 0.0
        %574 = vmatpush2.msra.mxu0 0.0
        %575 = vmatprep.subr.mxu0 0.0
        %576 = vmatpush2.msra.mxu0 0.0
        %577 = vmatprep.subr.mxu0 0.0
        %578 = vmatpush2.msra.mxu0 0.0
        %579 = vmatprep.subr.mxu0 0.0
        %580 = vmatpush2.msra.mxu0 0.0
        %581 = vmatprep.subr.mxu0 0.0
        %582 = vmatpush2.msra.mxu0 0.0
        %583 = vmatprep.subr.mxu0 0.0
        %584 = vmatpush2.msra.mxu0 0.0
        %585 = vmatprep.subr.mxu0 0.0
        %586 = vmatpush2.msra.mxu0 0.0
        %587 = vmatprep.subr.mxu0 0.0
        %588 = vmatpush2.msra.mxu0 0.0
        %589 = vmatprep.subr.mxu0 0.0
        %590 = vmatpush2.msra.mxu0 0.0
        %591 = vmatprep.subr.mxu0 0.0
        %592 = vmatpush2.msra.mxu0 0.0
        %593 = vmatprep.subr.mxu0 0.0
        %594 = vmatpush2.msra.mxu0 0.0
        %595 = vmatprep.subr.mxu0 0.0
        %596 = vmatpush2.msra.mxu0 0.0
        %597 = vmatprep.subr.mxu0 0.0
        %598 = vmatpush2.msra.mxu0 0.0
        %599 = vmatprep.subr.mxu0 0.0
        %600 = vmatpush2.msra.mxu0 0.0
        %601 = vmatprep.mubr.f32.mxu0 0.0
        %602 = vmatmul.mubr.f32.gmra.mxu0 %v520
        %v603 = vpop.f32.mrf.mxu0
        %v604 = vadd.f32 %v516, %v603
        %v605 = vpop.f32.mrf.mxu0
        %606 = vmatprep.mubr.f32.mxu0 0.0
        %607 = vmatmul.mubr.f32.gmra.mxu0 %v523
        %v608 = vpop.f32.mrf.mxu0
        %v609 = vadd.f32 %v516, %v608
        %v610 = vpop.f32.mrf.mxu0
        %611 = vmatprep.mubr.f32.mxu0 0.0
        %612 = vmatmul.mubr.f32.gmra.mxu0 %v526
        %v613 = vpop.f32.mrf.mxu0
        %v614 = vadd.f32 %v516, %v613
        %v615 = vpop.f32.mrf.mxu0
        %616 = vmatprep.mubr.f32.mxu0 0.0
        %617 = vmatmul.mubr.f32.gmra.mxu0 %v529
        %v618 = vpop.f32.mrf.mxu0
        %v619 = vadd.f32 %v516, %v618
        %v620 = vpop.f32.mrf.mxu0
        %621 = vmatprep.mubr.f32.mxu0 0.0
        %622 = vmatmul.mubr.f32.gmra.mxu0 %v532
        %v623 = vpop.f32.mrf.mxu0
        %v624 = vadd.f32 %v516, %v623
        %v625 = vpop.f32.mrf.mxu0
        %626 = vmatprep.mubr.f32.mxu0 0.0
        %627 = vmatmul.mubr.f32.gmra.mxu0 %v535
        %v628 = vpop.f32.mrf.mxu0
        %v629 = vadd.f32 %v516, %v628
        %v630 = vpop.f32.mrf.mxu0
        %631 = vdwg.mxu0
        %v632 = vlaneseq
        %v633 = vshrl.u32 %v632, 7
        %v634 = vadd.s32 %v633, 8
        %v635 = vadd.s32 %v633, 16
        %v636 = vadd.s32 %v633, 24
        %v637 = vadd.s32 %v633, 32
        %v638 = vadd.s32 %v633, 40
        %vm639 = vcmp.ge.s32.totalorder %v633, 8
        %vm640 = vcmp.ge.s32.totalorder %v634, 8
        %vm641 = vcmp.ge.s32.totalorder %v635, 8
        %vm642 = vcmp.ge.s32.totalorder %v636, 8
        %vm643 = vcmp.ge.s32.totalorder %v637, 8
        %vm644 = vcmp.ge.s32.totalorder %v638, 8
        %p645 = scmp.gt.s32.totalorder %s34, 0
        %s646 = scalar_select %p645, 1, 0
        %v647 = vstv %s646
        %vm648 = vcmp.eq.s32.totalorder %v647, 1
        %vm649 = vmor %vm639, %vm648
        %vm650 = vmor %vm640, %vm648
        %vm651 = vmor %vm641, %vm648
        %vm652 = vmor %vm642, %vm648
        %vm653 = vmor %vm643, %vm648
        %vm654 = vmor %vm644, %vm648
        %vm655 = vcmp.lt.s32.totalorder %v633, 40
        %vm656 = vcmp.lt.s32.totalorder %v634, 40
        %vm657 = vcmp.lt.s32.totalorder %v635, 40
        %vm658 = vcmp.lt.s32.totalorder %v636, 40
        %vm659 = vcmp.lt.s32.totalorder %v637, 40
        %vm660 = vcmp.lt.s32.totalorder %v638, 40
        %p661 = scmp.lt.s32.totalorder %s34, 1
        %s662 = scalar_select %p661, 1, 0
        %v663 = vstv %s662
        %vm664 = vcmp.eq.s32.totalorder %v663, 1
        %vm665 = vmor %vm655, %vm664
        %vm666 = vmor %vm656, %vm664
        %vm667 = vmor %vm657, %vm664
        %vm668 = vmor %vm658, %vm664
        %vm669 = vmor %vm659, %vm664
        %vm670 = vmor %vm660, %vm664
        %vm671 = vmand %vm649, %vm665
        %vm672 = vmand %vm650, %vm666
        %vm673 = vmand %vm651, %vm667
        %vm674 = vmand %vm652, %vm668
        %vm675 = vmand %vm653, %vm669
        %vm676 = vmand %vm654, %vm670
        %v677 = vsel %vm671, 1, 0
        %v678 = vsel %vm672, 1, 0
        %v679 = vsel %vm673, 1, 0
        %v680 = vsel %vm674, 1, 0
        %v681 = vsel %vm675, 1, 0
        %v682 = vsel %vm676, 1, 0
        %vm683 = vcmp.eq.s32.totalorder %v677, 1
        %vm684 = vcmp.eq.s32.totalorder %v678, 1
        %vm685 = vcmp.eq.s32.totalorder %v679, 1
        %vm686 = vcmp.eq.s32.totalorder %v680, 1
        %vm687 = vcmp.eq.s32.totalorder %v681, 1
        %vm688 = vcmp.eq.s32.totalorder %v682, 1
        %v689 = vsel %vm683, %v604, 0.0
        %v690 = vsel %vm684, %v609, 0.0
        %v691 = vsel %vm685, %v614, 0.0
        %v692 = vsel %vm686, %v619, 0.0
        %v693 = vsel %vm687, %v624, 0.0
        %v694 = vsel %vm688, %v629, 0.0
        %vm695 = vcmp.lt.s32.totalorder %v633, 0
        %v696 = vsub.s32 0, %v633
        %v697 = vsel %vm695, %v696, %v633
        %v698 = vshrl.u32 %v697, 3
        %v699 = vand.u32 %v697, 7
        %v700 = vsub.s32 0, %v699
        %v701 = vsel %vm695, %v700, %v699
        %vm702 = vcmp.lt.s32.totalorder %v634, 0
        %v703 = vsub.s32 0, %v634
        %v704 = vsel %vm702, %v703, %v634
        %v705 = vshrl.u32 %v704, 3
        %v706 = vand.u32 %v704, 7
        %v707 = vsub.s32 0, %v706
        %v708 = vsel %vm702, %v707, %v706
        %vm709 = vcmp.lt.s32.totalorder %v635, 0
        %v710 = vsub.s32 0, %v635
        %v711 = vsel %vm709, %v710, %v635
        %v712 = vshrl.u32 %v711, 3
        %v713 = vand.u32 %v711, 7
        %v714 = vsub.s32 0, %v713
        %v715 = vsel %vm709, %v714, %v713
        %vm716 = vcmp.lt.s32.totalorder %v636, 0
        %v717 = vsub.s32 0, %v636
        %v718 = vsel %vm716, %v717, %v636
        %v719 = vshrl.u32 %v718, 3
        %v720 = vand.u32 %v718, 7
        %v721 = vsub.s32 0, %v720
        %v722 = vsel %vm716, %v721, %v720
        %vm723 = vcmp.lt.s32.totalorder %v637, 0
        %v724 = vsub.s32 0, %v637
        %v725 = vsel %vm723, %v724, %v637
        %v726 = vshrl.u32 %v725, 3
        %v727 = vand.u32 %v725, 7
        %v728 = vsub.s32 0, %v727
        %v729 = vsel %vm723, %v728, %v727
        %vm730 = vcmp.lt.s32.totalorder %v638, 0
        %v731 = vsub.s32 0, %v638
        %v732 = vsel %vm730, %v731, %v638
        %v733 = vshrl.u32 %v732, 3
        %v734 = vand.u32 %v732, 7
        %v735 = vsub.s32 0, %v734
        %v736 = vsel %vm730, %v735, %v734
        %vm737 = vcmp.ne.s32.totalorder %v701, 0
        %vm738 = vcmp.ne.s32.totalorder %v708, 0
        %vm739 = vcmp.ne.s32.totalorder %v715, 0
        %vm740 = vcmp.ne.s32.totalorder %v722, 0
        %vm741 = vcmp.ne.s32.totalorder %v729, 0
        %vm742 = vcmp.ne.s32.totalorder %v736, 0
        %vm743 = vcmp.lt.s32.totalorder %v701, 0
        %vm744 = vcmp.lt.s32.totalorder %v708, 0
        %vm745 = vcmp.lt.s32.totalorder %v715, 0
        %vm746 = vcmp.lt.s32.totalorder %v722, 0
        %vm747 = vcmp.lt.s32.totalorder %v729, 0
        %vm748 = vcmp.lt.s32.totalorder %v736, 0
        %vm749 = vmand %vm743, %vm737
        %vm750 = vmand %vm744, %vm738
        %vm751 = vmand %vm745, %vm739
        %vm752 = vmand %vm746, %vm740
        %vm753 = vmand %vm747, %vm741
        %vm754 = vmand %vm748, %vm742
        %v755 = vadd.s32 %v701, 8
        %v756 = vadd.s32 %v708, 8
        %v757 = vadd.s32 %v715, 8
        %v758 = vadd.s32 %v722, 8
        %v759 = vadd.s32 %v729, 8
        %v760 = vadd.s32 %v736, 8
        %v761 = vsel %vm749, %v755, %v701
        %v762 = vsel %vm750, %v756, %v708
        %v763 = vsel %vm751, %v757, %v715
        %v764 = vsel %vm752, %v758, %v722
        %v765 = vsel %vm753, %v759, %v729
        %v766 = vsel %vm754, %v760, %v736
        %vm767 = vcmp.eq.s32.totalorder %v761, 0
        %vm768 = vcmp.eq.s32.totalorder %v762, 0
        %vm769 = vcmp.eq.s32.totalorder %v763, 0
        %vm770 = vcmp.eq.s32.totalorder %v764, 0
        %vm771 = vcmp.eq.s32.totalorder %v765, 0
        %vm772 = vcmp.eq.s32.totalorder %v766, 0
        %v773 = vrot.slane %v689, 7
        %v774 = vrot.slane %v690, 7
        %v775 = vrot.slane %v691, 7
        %v776 = vrot.slane %v692, 7
        %v777 = vrot.slane %v693, 7
        %v778 = vrot.slane %v694, 7
        %vm779 = vcmp.lt.s32.totalorder %v633, 1
        %v780 = vsel %vm779, %v777, %v778
        %v781 = vsel %vm779, %v776, %v777
        %v782 = vsel %vm779, %v775, %v776
        %v783 = vsel %vm779, %v774, %v775
        %v784 = vsel %vm779, %v773, %v774
        %v785 = vsel %vm779, %v778, %v773
        %v786 = vsel %vm767, 1, 0
        %v787 = vsel %vm768, 1, 0
        %v788 = vsel %vm769, 1, 0
        %v789 = vsel %vm770, 1, 0
        %v790 = vsel %vm771, 1, 0
        %v791 = vsel %vm772, 1, 0
        %vm792 = vcmp.eq.s32.totalorder %v786, 1
        %vm793 = vcmp.eq.s32.totalorder %v787, 1
        %vm794 = vcmp.eq.s32.totalorder %v788, 1
        %vm795 = vcmp.eq.s32.totalorder %v789, 1
        %vm796 = vcmp.eq.s32.totalorder %v790, 1
        %vm797 = vcmp.eq.s32.totalorder %v791, 1
        %v798 = vsel %vm792, 0.0, %v785
        %v799 = vsel %vm793, 0.0, %v784
        %v800 = vsel %vm794, 0.0, %v783
        %v801 = vsel %vm795, 0.0, %v782
        %v802 = vsel %vm796, 0.0, %v781
        %v803 = vsel %vm797, 0.0, %v780
        %vm804 = vcmp.eq.s32.totalorder %v761, 7
        %vm805 = vcmp.eq.s32.totalorder %v762, 7
        %vm806 = vcmp.eq.s32.totalorder %v763, 7
        %vm807 = vcmp.eq.s32.totalorder %v764, 7
        %vm808 = vcmp.eq.s32.totalorder %v765, 7
        %vm809 = vcmp.eq.s32.totalorder %v766, 7
        %v810 = vrot.slane %v689, 1
        %v811 = vrot.slane %v690, 1
        %v812 = vrot.slane %v691, 1
        %v813 = vrot.slane %v692, 1
        %v814 = vrot.slane %v693, 1
        %v815 = vrot.slane %v694, 1
        %vm816 = vcmp.lt.s32.totalorder %v633, 7
        %v817 = vsel %vm816, %v814, %v815
        %v818 = vsel %vm816, %v813, %v814
        %v819 = vsel %vm816, %v812, %v813
        %v820 = vsel %vm816, %v811, %v812
        %v821 = vsel %vm816, %v810, %v811
        %v822 = vsel %vm816, %v815, %v810
        %v823 = vsel %vm804, 1, 0
        %v824 = vsel %vm805, 1, 0
        %v825 = vsel %vm806, 1, 0
        %v826 = vsel %vm807, 1, 0
        %v827 = vsel %vm808, 1, 0
        %v828 = vsel %vm809, 1, 0
        %vm829 = vcmp.eq.s32.totalorder %v823, 1
        %vm830 = vcmp.eq.s32.totalorder %v824, 1
        %vm831 = vcmp.eq.s32.totalorder %v825, 1
        %vm832 = vcmp.eq.s32.totalorder %v826, 1
        %vm833 = vcmp.eq.s32.totalorder %v827, 1
        %vm834 = vcmp.eq.s32.totalorder %v828, 1
        %v835 = vsel %vm829, 0.0, %v821
        %v836 = vsel %vm830, 0.0, %v820
        %v837 = vsel %vm831, 0.0, %v819
        %v838 = vsel %vm832, 0.0, %v818
        %v839 = vsel %vm833, 0.0, %v817
        %v840 = vsel %vm834, 0.0, %v822
        %v841 = vld [vmem:[#allocation7] sm:$0xff]
        %v842 = vld [vmem:[#allocation7 + $0x8] sm:$0x1]
        %v843 = vlaneseq
        %v844 = vshrl.u32 %v843, 7
        %v845 = vsub.s32 0, %v844
        %v846 = vrot.slane %v841, %v845
        %v847 = vmul.f32 %v798, %v846
        %v848 = vmul.f32 %v799, %v846
        %v849 = vmul.f32 %v800, %v846
        %v850 = vmul.f32 %v801, %v846
        %v851 = vlaneseq
        %v852 = vshrl.u32 %v851, 7
        %v853 = vsub.s32 1, %v852
        %v854 = vrot.slane %v841, %v853
        %v855 = vmul.f32 %v689, %v854
        %v856 = vmul.f32 %v690, %v854
        %v857 = vmul.f32 %v691, %v854
        %v858 = vmul.f32 %v692, %v854
        %v859 = vadd.f32 %v847, %v855
        %v860 = vadd.f32 %v848, %v856
        %v861 = vadd.f32 %v849, %v857
        %v862 = vadd.f32 %v850, %v858
        %v863 = vlaneseq
        %v864 = vshrl.u32 %v863, 7
        %v865 = vsub.s32 2, %v864
        %v866 = vrot.slane %v841, %v865
        %v867 = vmul.f32 %v835, %v866
        %v868 = vmul.f32 %v836, %v866
        %v869 = vmul.f32 %v837, %v866
        %v870 = vmul.f32 %v838, %v866
        %v871 = vadd.f32 %v859, %v867
        %v872 = vadd.f32 %v860, %v868
        %v873 = vadd.f32 %v861, %v869
        %v874 = vadd.f32 %v862, %v870
        %v875 = vlaneseq
        %v876 = vshrl.u32 %v875, 7
        %v877 = vsub.s32 3, %v876
        %v878 = vrot.slane %v841, %v877
        %v879 = vmul.f32 %v799, %v878
        %v880 = vmul.f32 %v800, %v878
        %v881 = vmul.f32 %v801, %v878
        %v882 = vmul.f32 %v802, %v878
        %v883 = vadd.f32 %v871, %v879
        %v884 = vadd.f32 %v872, %v880
        %v885 = vadd.f32 %v873, %v881
        %v886 = vadd.f32 %v874, %v882
        %v887 = vlaneseq
        %v888 = vshrl.u32 %v887, 7
        %v889 = vsub.s32 4, %v888
        %v890 = vrot.slane %v841, %v889
        %v891 = vmul.f32 %v690, %v890
        %v892 = vmul.f32 %v691, %v890
        %v893 = vmul.f32 %v692, %v890
        %v894 = vmul.f32 %v693, %v890
        %v895 = vadd.f32 %v883, %v891
        %v896 = vadd.f32 %v884, %v892
        %v897 = vadd.f32 %v885, %v893
        %v898 = vadd.f32 %v886, %v894
        %v899 = vlaneseq
        %v900 = vshrl.u32 %v899, 7
        %v901 = vsub.s32 5, %v900
        %v902 = vrot.slane %v841, %v901
        %v903 = vmul.f32 %v836, %v902
        %v904 = vmul.f32 %v837, %v902
        %v905 = vmul.f32 %v838, %v902
        %v906 = vmul.f32 %v839, %v902
        %v907 = vadd.f32 %v895, %v903
        %v908 = vadd.f32 %v896, %v904
        %v909 = vadd.f32 %v897, %v905
        %v910 = vadd.f32 %v898, %v906
        %v911 = vlaneseq
        %v912 = vshrl.u32 %v911, 7
        %v913 = vsub.s32 6, %v912
        %v914 = vrot.slane %v841, %v913
        %v915 = vmul.f32 %v800, %v914
        %v916 = vmul.f32 %v801, %v914
        %v917 = vmul.f32 %v802, %v914
        %v918 = vmul.f32 %v803, %v914
        %v919 = vadd.f32 %v907, %v915
        %v920 = vadd.f32 %v908, %v916
        %v921 = vadd.f32 %v909, %v917
        %v922 = vadd.f32 %v910, %v918
        %v923 = vlaneseq
        %v924 = vshrl.u32 %v923, 7
        %v925 = vsub.s32 7, %v924
        %v926 = vrot.slane %v841, %v925
        %v927 = vmul.f32 %v691, %v926
        %v928 = vmul.f32 %v692, %v926
        %v929 = vmul.f32 %v693, %v926
        %v930 = vmul.f32 %v694, %v926
        %v931 = vadd.f32 %v919, %v927
        %v932 = vadd.f32 %v920, %v928
        %v933 = vadd.f32 %v921, %v929
        %v934 = vadd.f32 %v922, %v930
        %v935 = vlaneseq
        %v936 = vshrl.u32 %v935, 7
        %v937 = vsub.s32 0, %v936
        %v938 = vrot.slane %v842, %v937
        %v939 = vmul.f32 %v837, %v938
        %v940 = vmul.f32 %v838, %v938
        %v941 = vmul.f32 %v839, %v938
        %v942 = vmul.f32 %v840, %v938
        %v943 = vadd.f32 %v931, %v939
        %v944 = vadd.f32 %v932, %v940
        %v945 = vadd.f32 %v933, %v941
        %v946 = vadd.f32 %v934, %v942
        %v947 = vld [vmem:[%s6] sm:$0x1]
        %v949 = vlaneseq
        %v950 = vshrl.u32 %v949, 7
        %v951 = vsub.s32 0, %v950
        %v952 = vrot.slane %v947, %v951
        %v954 = vadd.f32 %v943, %v952
        %v955 = vadd.f32 %v944, %v952
        %v956 = vadd.f32 %v945, %v952
        %v957 = vadd.f32 %v946, %v952
        %v958 = vmul.f32 %v954, 0.5
        %v959 = vmul.f32 %v955, 0.5
        %v960 = vmul.f32 %v956, 0.5
        %v961 = vmul.f32 %v957, 0.5
        %v962 = vmul.f32 %v954, 0.70710677
        %v963 = vmul.f32 %v955, 0.70710677
        %v964 = vmul.f32 %v956, 0.70710677
        %v965 = vmul.f32 %v957, 0.70710677
        %v966 = verf.f32.pop %v962
        %v967 = verf.f32.pop %v963
        %v968 = verf.f32.pop %v964
        %v969 = verf.f32.pop %v965
        %v970 = vadd.f32 %v966, 1.0
        %v971 = vadd.f32 %v967, 1.0
        %v972 = vadd.f32 %v968, 1.0
        %v973 = vadd.f32 %v969, 1.0
        %v974 = vmul.f32 %v958, %v970
        %v975 = vmul.f32 %v959, %v971
        %v976 = vmul.f32 %v960, %v972
        %v977 = vmul.f32 %v961, %v973
        %v978 = vld [vmem:[%s7] sm:$0xff]
        %v979 = vld [vmem:[%s7 + $0x8] sm:$0xff]
        %v980 = vld [vmem:[%s7 + $0x10] sm:$0xff]
        %v981 = vld [vmem:[%s7 + $0x18] sm:$0xff]
        %v982 = vld [vmem:[%s7 + $0x20] sm:$0xff]
        %v983 = vld [vmem:[%s7 + $0x28] sm:$0xff]
        %v984 = vld [vmem:[%s7 + $0x30] sm:$0xff]
        %v985 = vld [vmem:[%s7 + $0x38] sm:$0xff]
        %v986 = vld [vmem:[%s7 + $0x40] sm:$0xff]
        %v987 = vld [vmem:[%s7 + $0x48] sm:$0xff]
        %v988 = vld [vmem:[%s7 + $0x50] sm:$0xff]
        %v989 = vld [vmem:[%s7 + $0x58] sm:$0xff]
        %v990 = vld [vmem:[%s7 + $0x60] sm:$0xff]
        %v991 = vld [vmem:[%s7 + $0x68] sm:$0xff]
        %v992 = vld [vmem:[%s7 + $0x70] sm:$0xff]
        %v993 = vld [vmem:[%s7 + $0x78] sm:$0xff]
        %v994 = vld [vmem:[%s8] sm:$0x1]
        %v996 = vlaneseq
        %v997 = vshrl.u32 %v996, 7
        %v998 = vsub.s32 0, %v997
        %v999 = vrot.slane %v994, %v998
        %1001 = vmatprep.subr.mxu0 0.0
        %1002 = vmatpush1.msra.mxu0 %v993
        %1003 = vmatprep.subr.mxu0 0.0
        %1004 = vmatpush1.msra.mxu0 %v992
        %1005 = vmatprep.subr.mxu0 0.0
        %1006 = vmatpush1.msra.mxu0 %v991
        %1007 = vmatprep.subr.mxu0 0.0
        %1008 = vmatpush1.msra.mxu0 %v990
        %1009 = vmatprep.subr.mxu0 0.0
        %1010 = vmatpush1.msra.mxu0 %v989
        %1011 = vmatprep.subr.mxu0 0.0
        %1012 = vmatpush1.msra.mxu0 %v988
        %1013 = vmatprep.subr.mxu0 0.0
        %1014 = vmatpush1.msra.mxu0 %v987
        %1015 = vmatprep.subr.mxu0 0.0
        %1016 = vmatpush1.msra.mxu0 %v986
        %1017 = vmatprep.subr.mxu0 0.0
        %1018 = vmatpush1.msra.mxu0 %v985
        %1019 = vmatprep.subr.mxu0 0.0
        %1020 = vmatpush1.msra.mxu0 %v984
        %1021 = vmatprep.subr.mxu0 0.0
        %1022 = vmatpush1.msra.mxu0 %v983
        %1023 = vmatprep.subr.mxu0 0.0
        %1024 = vmatpush1.msra.mxu0 %v982
        %1025 = vmatprep.subr.mxu0 0.0
        %1026 = vmatpush1.msra.mxu0 %v981
        %1027 = vmatprep.subr.mxu0 0.0
        %1028 = vmatpush1.msra.mxu0 %v980
        %1029 = vmatprep.subr.mxu0 0.0
        %1030 = vmatpush1.msra.mxu0 %v979
        %1031 = vmatprep.subr.mxu0 0.0
        %1032 = vmatpush1.msra.mxu0 %v978
        %1033 = vmatprep.subr.mxu0 0.0
        %1034 = vmatpush2.msra.mxu0 0.0
        %1035 = vmatprep.subr.mxu0 0.0
        %1036 = vmatpush2.msra.mxu0 0.0
        %1037 = vmatprep.subr.mxu0 0.0
        %1038 = vmatpush2.msra.mxu0 0.0
        %1039 = vmatprep.subr.mxu0 0.0
        %1040 = vmatpush2.msra.mxu0 0.0
        %1041 = vmatprep.subr.mxu0 0.0
        %1042 = vmatpush2.msra.mxu0 0.0
        %1043 = vmatprep.subr.mxu0 0.0
        %1044 = vmatpush2.msra.mxu0 0.0
        %1045 = vmatprep.subr.mxu0 0.0
        %1046 = vmatpush2.msra.mxu0 0.0
        %1047 = vmatprep.subr.mxu0 0.0
        %1048 = vmatpush2.msra.mxu0 0.0
        %1049 = vmatprep.subr.mxu0 0.0
        %1050 = vmatpush2.msra.mxu0 0.0
        %1051 = vmatprep.subr.mxu0 0.0
        %1052 = vmatpush2.msra.mxu0 0.0
        %1053 = vmatprep.subr.mxu0 0.0
        %1054 = vmatpush2.msra.mxu0 0.0
        %1055 = vmatprep.subr.mxu0 0.0
        %1056 = vmatpush2.msra.mxu0 0.0
        %1057 = vmatprep.subr.mxu0 0.0
        %1058 = vmatpush2.msra.mxu0 0.0
        %1059 = vmatprep.subr.mxu0 0.0
        %1060 = vmatpush2.msra.mxu0 0.0
        %1061 = vmatprep.subr.mxu0 0.0
        %1062 = vmatpush2.msra.mxu0 0.0
        %1063 = vmatprep.subr.mxu0 0.0
        %1064 = vmatpush2.msra.mxu0 0.0
        %1065 = vmatprep.mubr.f32.mxu0 0.0
        %1066 = vmatmul.mubr.f32.gmra.mxu0 %v974
        %v1067 = vpop.f32.mrf.mxu0
        %v1068 = vadd.f32 %v999, %v1067
        %v1069 = vpop.f32.mrf.mxu0
        %1070 = vmatprep.mubr.f32.mxu0 0.0
        %1071 = vmatmul.mubr.f32.gmra.mxu0 %v975
        %v1072 = vpop.f32.mrf.mxu0
        %v1073 = vadd.f32 %v999, %v1072
        %v1074 = vpop.f32.mrf.mxu0
        %1075 = vmatprep.mubr.f32.mxu0 0.0
        %1076 = vmatmul.mubr.f32.gmra.mxu0 %v976
        %v1077 = vpop.f32.mrf.mxu0
        %v1078 = vadd.f32 %v999, %v1077
        %v1079 = vpop.f32.mrf.mxu0
        %1080 = vmatprep.mubr.f32.mxu0 0.0
        %1081 = vmatmul.mubr.f32.gmra.mxu0 %v977
        %v1082 = vpop.f32.mrf.mxu0
        %v1083 = vadd.f32 %v999, %v1082
        %v1084 = vpop.f32.mrf.mxu0
        %1085 = vdwg.mxu0
        %1086 = vst.msk [vmem:[%s478] sm:$0xff] %vm518, %v1068
        %1087 = vst.msk [vmem:[%s478 + $0x8] sm:$0xff] %vm518, %v1073
        %1088 = vst.msk [vmem:[%s478 + $0x10] sm:$0xff] %vm518, %v1078
        %1089 = vst.msk [vmem:[%s478 + $0x18] sm:$0xff] %vm518, %v1083
        %s1090 = sand.u32 %s277, 1
        %s1091 = scalar_lea.sflag [#allocation4], %s1090
        %s1092 = sand.u32 %s277, 1
        %s1093 = smul.addr %s1092, 32
        %s1094 = scalar_lea.vmem [#allocation8], %s1093
        // Predicated region
        $region69: #{tpu_custom_call.1} parent=55 // pred_check
          %p1095 = pneg %p287
        $region70: #{tpu_custom_call.1} parent=55 // pred_check_branch
          %1097 = sbr.rel (%p1095) target = $region72
        $region71: #{tpu_custom_call.1} parent=55 // pred_region
          %s1098 = smul.u32 4, %s34
          %s1100 = ssub.s32 512, 512
          %1101 = vsyncadd %s1091, %s1100
          %s1102 = smul.addr %s33, 8
          %s1103 = sadd.s32 %s1098, %s1102
          %s1104 = smul.addr %s1103, 128
          %s1105 = scalar_lea.hbm %s9, %s1104
          %s1106 = sshll.u32 %s1094, 4
          %s1107 = int_to_ptr.vmem [resolvable:$true] %s1106
          %1112 = dma.vmem_to_hbm [thread:$0]  %s1107, 512, %s1105, %s1091, 128, 128, 8
        $region72: #{tpu_custom_call.1} parent=55 // pred_fallthru
          _
      $region56: #{tpu_custom_call.1} parent=5 // pred_fallthru
        _
      %p1113 = scmp.le.s32.totalorder 2, %s24
      // Predicated region
      $region73: #{tpu_custom_call.1} parent=5 // pred_check
        %p1114 = pneg %p1113
      $region74: #{tpu_custom_call.1} parent=5 // pred_check_branch
        %1116 = sbr.rel (%p1114) target = $region76
      $region75: #{tpu_custom_call.1} parent=5 // pred_region
        %s1117 = ssub.s32 %s24, 2
        // Predicated region
        $region77: #{tpu_custom_call.1} parent=75 // pred_check
          %p1118 = pneg %p293
        $region78: #{tpu_custom_call.1} parent=75 // pred_check_branch
          %1120 = sbr.rel (%p1118) target = $region80
        $region79: #{tpu_custom_call.1} parent=75 // pred_region
          %s1121 = sand.u32 %s278, 1
          %s1122 = scalar_lea.sflag [#allocation4], %s1121
          %s1123 = sand.u32 %s278, 1
          %s1124 = smul.addr %s1123, 32
          %s1125 = scalar_lea.vmem [#allocation8], %s1124
          %1126 = dma.done %s1122, 512
        $region80: #{tpu_custom_call.1} parent=75 // pred_fallthru
          _
      $region76: #{tpu_custom_call.1} parent=5 // pred_fallthru
        _
    $region6: #{tpu_custom_call.1} parent=1 // loop_footer
      %s28 = sadd.s32 1, %s24
    $region7: #{tpu_custom_call.1} parent=1 // loop_footer_branch
      %23 = sbr.rel target = $region3
    $region8: #{tpu_custom_call.1} parent=1 // loop_exit
      _
    %1127 = vsyncpa [#allocation3], 1
    %s1128 = scalar_lea.sflag [#allocation3], 1
    %1129 = vsyncpa %s1128, 1
    %1130 = vsyncpa [#allocation6], 1
    %s1131 = scalar_lea.sflag [#allocation6], 1
    %1132 = vsyncpa %s1131, 1
    %1133 = vsyncpa [#allocation4], 1
    %s1134 = scalar_lea.sflag [#allocation4], 1
    %1135 = vsyncpa %s1134, 1

</llo_original>
